<compile_context>
chip_gen: v7x
topology: tpu7x:2x2x1
jax: 0.10.0
libtpu: 0.0.40
codegen_flags: <defaults>
</compile_context>

<pallas_src>
import jax
import jax.numpy as jnp
import numpy as np
from jax import lax
from jax.experimental import pallas as pl
from jax.experimental.pallas import tpu as pltpu


def textcnn_kernel(tok_ref,      # SMEM (B*C,) int32   scalar-prefetched token ids
                   embed_ref,    # VMEM (V, L)         resident embedding table
                   wcat_ref,     # VMEM (C, 3C)        BN-folded conv taps [left|center|right]
                   shift_ref,    # VMEM (C, 1)         BN-folded bias / shift
                   wh_ref,       # VMEM (C, N)         head weight
                   bh_ref,       # VMEM (1, N)         head bias
                   out_ref,      # VMEM (BB, N)        logits block
                   x_buf):       # VMEM scratch (C, BB*L)
    g = pl.program_id(0)
    C, W = x_buf.shape
    L = embed_ref.shape[1]
    BB = W // L

    # ---- in-kernel embedding gather: SMEM token ids -> (C, BB*L) activation tile ----
    base = g * (BB * C)
    for bb in range(BB):
        for c in range(C):
            tok = tok_ref[base + bb * C + c]
            x_buf[pl.ds(c, 1), pl.ds(bb * L, L)] = embed_ref[pl.ds(tok, 1), :]

    x = x_buf[...]                                               # (C, BB*L) f32

    # ---- Conv1d(k=3, padding=1), all BB elements batched along the lane axis ----
    lane = lax.broadcasted_iota(jnp.int32, (C, W), 1)
    pos = lane % L                                               # position inside each element
    # x_left[:, j]  = same-element x[:, l-1]  (zero at l == 0); wrap columns are masked off
    x_left = jnp.where(pos >= 1, pltpu.roll(x, shift=1, axis=1), 0.0)
    # x_right[:, j] = same-element x[:, l+1]  (zero at l == L-1)
    x_right = jnp.where(pos <= L - 2, pltpu.roll(x, shift=W - 1, axis=1), 0.0)
    x_cat = jnp.concatenate([x_left, x, x_right], axis=0)        # (3C, BB*L)

    # single fused MXU matmul; BatchNorm(eval) + conv bias already folded into weights/shift
    y = jnp.dot(wcat_ref[...], x_cat, preferred_element_type=jnp.float32)
    y = jnp.maximum(y + shift_ref[...], 0.0)                     # (C, BB*L)

    # ---- MaxPool1d(embed_dim) + Linear head ----
    wh = wh_ref[...]                                             # (C, N)
    rows = []
    for bb in range(BB):
        pooled = jnp.max(y[:, bb * L:(bb + 1) * L], axis=1, keepdims=True)   # (C, 1)
        rows.append(jnp.sum(pooled * wh, axis=0, keepdims=True))             # (1, N)
    out_ref[...] = jnp.concatenate(rows, axis=0) + bh_ref[...]               # (BB, N)


def textcnn_forward(tokens, params, eps=1e-5):
    B, C = tokens.shape
    V, L = params["embed"].shape
    N = params["wh"].shape[1]

    # Batch block per grid step: whole batch for small B, else 8-aligned blocks.
    # (On v7x with large B this naturally leaves >= 2 parallel grid steps for the 2 TCs.)
    BB = B if B <= 8 else (8 if B % 8 == 0 else B)
    grid = (B // BB,)

    # Fold BatchNorm (eval) and conv bias into the conv weights / shift (trace-time, tiny).
    scale = params["bn_gamma"] / jnp.sqrt(params["bn_var"] + eps)            # (C,)
    w = params["conv_w"].astype(jnp.float32)                                 # (C, C, 3)  PyTorch OIH
    wcat = jnp.concatenate([w[:, :, 0], w[:, :, 1], w[:, :, 2]], axis=1)     # (C, 3C)
    wcat = scale[:, None] * wcat
    shift = (params["bn_beta"]
             + scale * (params["conv_b"] - params["bn_mean"])).reshape(C, 1)

    embed = params["embed"].astype(jnp.float32)
    wh = params["wh"].astype(jnp.float32)
    bh = params["bh"].reshape(1, N).astype(jnp.float32)
    tok_flat = tokens.reshape(-1).astype(jnp.int32)

    out = pl.pallas_call(
        textcnn_kernel,
        out_shape=jax.ShapeDtypeStruct((B, N), jnp.float32),
        grid_spec=pltpu.PrefetchScalarGridSpec(
            num_scalar_prefetch=1,
            grid=grid,
            in_specs=[
                pl.BlockSpec((V, L), lambda g, tok: (0, 0)),          # embed table (resident)
                pl.BlockSpec((C, 3 * C), lambda g, tok: (0, 0)),      # fused conv weights
                pl.BlockSpec((C, 1), lambda g, tok: (0, 0)),          # folded shift
                pl.BlockSpec((C, N), lambda g, tok: (0, 0)),          # head weight
                pl.BlockSpec((1, N), lambda g, tok: (0, 0)),          # head bias
            ],
            out_specs=pl.BlockSpec((BB, N), lambda g, tok: (g, 0)),
            scratch_shapes=[pltpu.VMEM((C, BB * L), jnp.float32)],
        ),
        compiler_params=pltpu.CompilerParams(
            dimension_semantics=("parallel",)),
    )(tok_flat, embed, wcat, shift, wh, bh)
    return out                                                   # (B, class_num)


def textcnn_reference(tokens, params, eps=1e-5):
    emb = params["embed"][tokens].astype(jnp.float32)            # (B, C, L)
    conv = jax.lax.conv_general_dilated(
        emb, params["conv_w"], window_strides=(1,), padding=((1, 1),),
        dimension_numbers=("NCH", "OIH", "NCH"))
    conv = conv + params["conv_b"][None, :, None]
    scale = params["bn_gamma"] / jnp.sqrt(params["bn_var"] + eps)
    y = (conv - params["bn_mean"][None, :, None]) * scale[None, :, None] \
        + params["bn_beta"][None, :, None]
    y = jnp.maximum(y, 0.0)
    pooled = jnp.max(y, axis=-1)                                 # (B, C)
    return pooled @ params["wh"] + params["bh"]


if __name__ == "__main__":
    vab_size, max_len, embed_dim, class_num, batch = 50, 16, 128, 4, 4

    key = jax.random.PRNGKey(0)
    ks = jax.random.split(key, 10)
    params = {
        "embed":    0.1 * jax.random.normal(ks[0], (vab_size, embed_dim), jnp.float32),
        "conv_w":   0.1 * jax.random.normal(ks[1], (max_len, max_len, 3), jnp.float32),
        "conv_b":   0.1 * jax.random.normal(ks[2], (max_len,), jnp.float32),
        "bn_gamma": 1.0 + 0.1 * jax.random.normal(ks[3], (max_len,), jnp.float32),
        "bn_beta":  0.1 * jax.random.normal(ks[4], (max_len,), jnp.float32),
        "bn_mean":  0.1 * jax.random.normal(ks[5], (max_len,), jnp.float32),
        "bn_var":   0.5 + jnp.abs(jax.random.normal(ks[6], (max_len,), jnp.float32)),
        "wh":       0.1 * jax.random.normal(ks[7], (max_len, class_num), jnp.float32),
        "bh":       0.1 * jax.random.normal(ks[8], (class_num,), jnp.float32),
    }
    tokens = jax.random.randint(ks[9], (batch, max_len), 0, vab_size, dtype=jnp.int32)

    out = jax.block_until_ready(textcnn_forward(tokens, params))
    ref = textcnn_reference(tokens, params)
    assert out.shape == (batch, class_num)
    assert np.allclose(np.asarray(out), np.asarray(ref), atol=1e-4, rtol=1e-4)
    print("KERNEL_OK")
</pallas_src>

<mosaic_0001>
module attributes {stable_mosaic.version = 11 : i64} {
  func.func @textcnn_kernel(%arg0: i32, %arg1: memref<64xi32, #tpu.memory_space<smem>>, %arg2: memref<50x128xf32, #tpu.memory_space<vmem>>, %arg3: memref<16x48xf32, #tpu.memory_space<vmem>>, %arg4: memref<16x1xf32, #tpu.memory_space<vmem>>, %arg5: memref<16x4xf32, #tpu.memory_space<vmem>>, %arg6: memref<1x4xf32, #tpu.memory_space<vmem>>, %arg7: memref<4x4xf32, #tpu.memory_space<vmem>>, %arg8: memref<16x512xf32, #tpu.memory_space<vmem>>) attributes {dimension_semantics = [#tpu.dimension_semantics<parallel>], iteration_bounds = array<i64: 1>, scalar_prefetch = 1 : i64, scratch_operands = 1 : i64, tpu.core_type = #tpu.core_type<tc>, window_params = [{pipeline_mode = #tpu.pipeline_mode<synchronous>, transform_indices = @transform_0, window_bounds = array<i64: 50, 128>}, {pipeline_mode = #tpu.pipeline_mode<synchronous>, transform_indices = @transform_1, window_bounds = array<i64: 16, 48>}, {pipeline_mode = #tpu.pipeline_mode<synchronous>, transform_indices = @transform_2, window_bounds = array<i64: 16, 1>}, {pipeline_mode = #tpu.pipeline_mode<synchronous>, transform_indices = @transform_3, window_bounds = array<i64: 16, 4>}, {pipeline_mode = #tpu.pipeline_mode<synchronous>, transform_indices = @transform_4, window_bounds = array<i64: 1, 4>}, {transform_indices = @transform_5, window_bounds = array<i64: 4, 4>}]} {
    %c64_i32 = arith.constant 64 : i32
    %0 = arith.muli %arg0, %c64_i32 : i32
    %c0_i32 = arith.constant 0 : i32
    %1 = arith.addi %0, %c0_i32 : i32
    %c0_i32_0 = arith.constant 0 : i32
    %2 = arith.addi %1, %c0_i32_0 : i32
    %3 = arith.index_cast %2 : i32 to index
    %4 = memref.load %arg1[%3] : memref<64xi32, #tpu.memory_space<smem>>
    %5 = arith.index_cast %4 : i32 to index
    %c0 = arith.constant 0 : index
    %6 = vector.load %arg2[%5, %c0] : memref<50x128xf32, #tpu.memory_space<vmem>>, vector<1x128xf32>
    %c0_1 = arith.constant 0 : index
    %c0_2 = arith.constant 0 : index
    %7 = vector.load %arg8[%c0_1, %c0_2] : memref<16x512xf32, #tpu.memory_space<vmem>>, vector<1x128xf32>
    tpu.vector_store %arg8[%c0_1, %c0_2], %6 {strides = array<i32>} : memref<16x512xf32, #tpu.memory_space<vmem>>, vector<1x128xf32>,
    %c0_i32_3 = arith.constant 0 : i32
    %8 = arith.addi %0, %c0_i32_3 : i32
    %c1_i32 = arith.constant 1 : i32
    %9 = arith.addi %8, %c1_i32 : i32
    %10 = arith.index_cast %9 : i32 to index
    %11 = memref.load %arg1[%10] : memref<64xi32, #tpu.memory_space<smem>>
    %12 = arith.index_cast %11 : i32 to index
    %c0_4 = arith.constant 0 : index
    %13 = vector.load %arg2[%12, %c0_4] : memref<50x128xf32, #tpu.memory_space<vmem>>, vector<1x128xf32>
    %c1 = arith.constant 1 : index
    %c0_5 = arith.constant 0 : index
    %14 = vector.load %arg8[%c1, %c0_5] : memref<16x512xf32, #tpu.memory_space<vmem>>, vector<1x128xf32>
    tpu.vector_store %arg8[%c1, %c0_5], %13 {strides = array<i32>} : memref<16x512xf32, #tpu.memory_space<vmem>>, vector<1x128xf32>,
    %c0_i32_6 = arith.constant 0 : i32
    %15 = arith.addi %0, %c0_i32_6 : i32
    %c2_i32 = arith.constant 2 : i32
    %16 = arith.addi %15, %c2_i32 : i32
    %17 = arith.index_cast %16 : i32 to index
    %18 = memref.load %arg1[%17] : memref<64xi32, #tpu.memory_space<smem>>
    %19 = arith.index_cast %18 : i32 to index
    %c0_7 = arith.constant 0 : index
    %20 = vector.load %arg2[%19, %c0_7] : memref<50x128xf32, #tpu.memory_space<vmem>>, vector<1x128xf32>
    %c2 = arith.constant 2 : index
    %c0_8 = arith.constant 0 : index
    %21 = vector.load %arg8[%c2, %c0_8] : memref<16x512xf32, #tpu.memory_space<vmem>>, vector<1x128xf32>
    tpu.vector_store %arg8[%c2, %c0_8], %20 {strides = array<i32>} : memref<16x512xf32, #tpu.memory_space<vmem>>, vector<1x128xf32>,
    %c0_i32_9 = arith.constant 0 : i32
    %22 = arith.addi %0, %c0_i32_9 : i32
    %c3_i32 = arith.constant 3 : i32
    %23 = arith.addi %22, %c3_i32 : i32
    %24 = arith.index_cast %23 : i32 to index
    %25 = memref.load %arg1[%24] : memref<64xi32, #tpu.memory_space<smem>>
    %26 = arith.index_cast %25 : i32 to index
    %c0_10 = arith.constant 0 : index
    %27 = vector.load %arg2[%26, %c0_10] : memref<50x128xf32, #tpu.memory_space<vmem>>, vector<1x128xf32>
    %c3 = arith.constant 3 : index
    %c0_11 = arith.constant 0 : index
    %28 = vector.load %arg8[%c3, %c0_11] : memref<16x512xf32, #tpu.memory_space<vmem>>, vector<1x128xf32>
    tpu.vector_store %arg8[%c3, %c0_11], %27 {strides = array<i32>} : memref<16x512xf32, #tpu.memory_space<vmem>>, vector<1x128xf32>,
    %c0_i32_12 = arith.constant 0 : i32
    %29 = arith.addi %0, %c0_i32_12 : i32
    %c4_i32 = arith.constant 4 : i32
    %30 = arith.addi %29, %c4_i32 : i32
    %31 = arith.index_cast %30 : i32 to index
    %32 = memref.load %arg1[%31] : memref<64xi32, #tpu.memory_space<smem>>
    %33 = arith.index_cast %32 : i32 to index
    %c0_13 = arith.constant 0 : index
    %34 = vector.load %arg2[%33, %c0_13] : memref<50x128xf32, #tpu.memory_space<vmem>>, vector<1x128xf32>
    %c4 = arith.constant 4 : index
    %c0_14 = arith.constant 0 : index
    %35 = vector.load %arg8[%c4, %c0_14] : memref<16x512xf32, #tpu.memory_space<vmem>>, vector<1x128xf32>
    tpu.vector_store %arg8[%c4, %c0_14], %34 {strides = array<i32>} : memref<16x512xf32, #tpu.memory_space<vmem>>, vector<1x128xf32>,
    %c0_i32_15 = arith.constant 0 : i32
    %36 = arith.addi %0, %c0_i32_15 : i32
    %c5_i32 = arith.constant 5 : i32
    %37 = arith.addi %36, %c5_i32 : i32
    %38 = arith.index_cast %37 : i32 to index
    %39 = memref.load %arg1[%38] : memref<64xi32, #tpu.memory_space<smem>>
    %40 = arith.index_cast %39 : i32 to index
    %c0_16 = arith.constant 0 : index
    %41 = vector.load %arg2[%40, %c0_16] : memref<50x128xf32, #tpu.memory_space<vmem>>, vector<1x128xf32>
    %c5 = arith.constant 5 : index
    %c0_17 = arith.constant 0 : index
    %42 = vector.load %arg8[%c5, %c0_17] : memref<16x512xf32, #tpu.memory_space<vmem>>, vector<1x128xf32>
    tpu.vector_store %arg8[%c5, %c0_17], %41 {strides = array<i32>} : memref<16x512xf32, #tpu.memory_space<vmem>>, vector<1x128xf32>,
    %c0_i32_18 = arith.constant 0 : i32
    %43 = arith.addi %0, %c0_i32_18 : i32
    %c6_i32 = arith.constant 6 : i32
    %44 = arith.addi %43, %c6_i32 : i32
    %45 = arith.index_cast %44 : i32 to index
    %46 = memref.load %arg1[%45] : memref<64xi32, #tpu.memory_space<smem>>
    %47 = arith.index_cast %46 : i32 to index
    %c0_19 = arith.constant 0 : index
    %48 = vector.load %arg2[%47, %c0_19] : memref<50x128xf32, #tpu.memory_space<vmem>>, vector<1x128xf32>
    %c6 = arith.constant 6 : index
    %c0_20 = arith.constant 0 : index
    %49 = vector.load %arg8[%c6, %c0_20] : memref<16x512xf32, #tpu.memory_space<vmem>>, vector<1x128xf32>
    tpu.vector_store %arg8[%c6, %c0_20], %48 {strides = array<i32>} : memref<16x512xf32, #tpu.memory_space<vmem>>, vector<1x128xf32>,
    %c0_i32_21 = arith.constant 0 : i32
    %50 = arith.addi %0, %c0_i32_21 : i32
    %c7_i32 = arith.constant 7 : i32
    %51 = arith.addi %50, %c7_i32 : i32
    %52 = arith.index_cast %51 : i32 to index
    %53 = memref.load %arg1[%52] : memref<64xi32, #tpu.memory_space<smem>>
    %54 = arith.index_cast %53 : i32 to index
    %c0_22 = arith.constant 0 : index
    %55 = vector.load %arg2[%54, %c0_22] : memref<50x128xf32, #tpu.memory_space<vmem>>, vector<1x128xf32>
    %c7 = arith.constant 7 : index
    %c0_23 = arith.constant 0 : index
    %56 = vector.load %arg8[%c7, %c0_23] : memref<16x512xf32, #tpu.memory_space<vmem>>, vector<1x128xf32>
    tpu.vector_store %arg8[%c7, %c0_23], %55 {strides = array<i32>} : memref<16x512xf32, #tpu.memory_space<vmem>>, vector<1x128xf32>,
    %c0_i32_24 = arith.constant 0 : i32
    %57 = arith.addi %0, %c0_i32_24 : i32
    %c8_i32 = arith.constant 8 : i32
    %58 = arith.addi %57, %c8_i32 : i32
    %59 = arith.index_cast %58 : i32 to index
    %60 = memref.load %arg1[%59] : memref<64xi32, #tpu.memory_space<smem>>
    %61 = arith.index_cast %60 : i32 to index
    %c0_25 = arith.constant 0 : index
    %62 = vector.load %arg2[%61, %c0_25] : memref<50x128xf32, #tpu.memory_space<vmem>>, vector<1x128xf32>
    %c8 = arith.constant 8 : index
    %c0_26 = arith.constant 0 : index
    %63 = vector.load %arg8[%c8, %c0_26] : memref<16x512xf32, #tpu.memory_space<vmem>>, vector<1x128xf32>
    tpu.vector_store %arg8[%c8, %c0_26], %62 {strides = array<i32>} : memref<16x512xf32, #tpu.memory_space<vmem>>, vector<1x128xf32>,
    %c0_i32_27 = arith.constant 0 : i32
    %64 = arith.addi %0, %c0_i32_27 : i32
    %c9_i32 = arith.constant 9 : i32
    %65 = arith.addi %64, %c9_i32 : i32
    %66 = arith.index_cast %65 : i32 to index
    %67 = memref.load %arg1[%66] : memref<64xi32, #tpu.memory_space<smem>>
    %68 = arith.index_cast %67 : i32 to index
    %c0_28 = arith.constant 0 : index
    %69 = vector.load %arg2[%68, %c0_28] : memref<50x128xf32, #tpu.memory_space<vmem>>, vector<1x128xf32>
    %c9 = arith.constant 9 : index
    %c0_29 = arith.constant 0 : index
    %70 = vector.load %arg8[%c9, %c0_29] : memref<16x512xf32, #tpu.memory_space<vmem>>, vector<1x128xf32>
    tpu.vector_store %arg8[%c9, %c0_29], %69 {strides = array<i32>} : memref<16x512xf32, #tpu.memory_space<vmem>>, vector<1x128xf32>,
    %c0_i32_30 = arith.constant 0 : i32
    %71 = arith.addi %0, %c0_i32_30 : i32
    %c10_i32 = arith.constant 10 : i32
    %72 = arith.addi %71, %c10_i32 : i32
    %73 = arith.index_cast %72 : i32 to index
    %74 = memref.load %arg1[%73] : memref<64xi32, #tpu.memory_space<smem>>
    %75 = arith.index_cast %74 : i32 to index
    %c0_31 = arith.constant 0 : index
    %76 = vector.load %arg2[%75, %c0_31] : memref<50x128xf32, #tpu.memory_space<vmem>>, vector<1x128xf32>
    %c10 = arith.constant 10 : index
    %c0_32 = arith.constant 0 : index
    %77 = vector.load %arg8[%c10, %c0_32] : memref<16x512xf32, #tpu.memory_space<vmem>>, vector<1x128xf32>
    tpu.vector_store %arg8[%c10, %c0_32], %76 {strides = array<i32>} : memref<16x512xf32, #tpu.memory_space<vmem>>, vector<1x128xf32>,
    %c0_i32_33 = arith.constant 0 : i32
    %78 = arith.addi %0, %c0_i32_33 : i32
    %c11_i32 = arith.constant 11 : i32
    %79 = arith.addi %78, %c11_i32 : i32
    %80 = arith.index_cast %79 : i32 to index
    %81 = memref.load %arg1[%80] : memref<64xi32, #tpu.memory_space<smem>>
    %82 = arith.index_cast %81 : i32 to index
    %c0_34 = arith.constant 0 : index
    %83 = vector.load %arg2[%82, %c0_34] : memref<50x128xf32, #tpu.memory_space<vmem>>, vector<1x128xf32>
    %c11 = arith.constant 11 : index
    %c0_35 = arith.constant 0 : index
    %84 = vector.load %arg8[%c11, %c0_35] : memref<16x512xf32, #tpu.memory_space<vmem>>, vector<1x128xf32>
    tpu.vector_store %arg8[%c11, %c0_35], %83 {strides = array<i32>} : memref<16x512xf32, #tpu.memory_space<vmem>>, vector<1x128xf32>,
    %c0_i32_36 = arith.constant 0 : i32
    %85 = arith.addi %0, %c0_i32_36 : i32
    %c12_i32 = arith.constant 12 : i32
    %86 = arith.addi %85, %c12_i32 : i32
    %87 = arith.index_cast %86 : i32 to index
    %88 = memref.load %arg1[%87] : memref<64xi32, #tpu.memory_space<smem>>
    %89 = arith.index_cast %88 : i32 to index
    %c0_37 = arith.constant 0 : index
    %90 = vector.load %arg2[%89, %c0_37] : memref<50x128xf32, #tpu.memory_space<vmem>>, vector<1x128xf32>
    %c12 = arith.constant 12 : index
    %c0_38 = arith.constant 0 : index
    %91 = vector.load %arg8[%c12, %c0_38] : memref<16x512xf32, #tpu.memory_space<vmem>>, vector<1x128xf32>
    tpu.vector_store %arg8[%c12, %c0_38], %90 {strides = array<i32>} : memref<16x512xf32, #tpu.memory_space<vmem>>, vector<1x128xf32>,
    %c0_i32_39 = arith.constant 0 : i32
    %92 = arith.addi %0, %c0_i32_39 : i32
    %c13_i32 = arith.constant 13 : i32
    %93 = arith.addi %92, %c13_i32 : i32
    %94 = arith.index_cast %93 : i32 to index
    %95 = memref.load %arg1[%94] : memref<64xi32, #tpu.memory_space<smem>>
    %96 = arith.index_cast %95 : i32 to index
    %c0_40 = arith.constant 0 : index
    %97 = vector.load %arg2[%96, %c0_40] : memref<50x128xf32, #tpu.memory_space<vmem>>, vector<1x128xf32>
    %c13 = arith.constant 13 : index
    %c0_41 = arith.constant 0 : index
    %98 = vector.load %arg8[%c13, %c0_41] : memref<16x512xf32, #tpu.memory_space<vmem>>, vector<1x128xf32>
    tpu.vector_store %arg8[%c13, %c0_41], %97 {strides = array<i32>} : memref<16x512xf32, #tpu.memory_space<vmem>>, vector<1x128xf32>,
    %c0_i32_42 = arith.constant 0 : i32
    %99 = arith.addi %0, %c0_i32_42 : i32
    %c14_i32 = arith.constant 14 : i32
    %100 = arith.addi %99, %c14_i32 : i32
    %101 = arith.index_cast %100 : i32 to index
    %102 = memref.load %arg1[%101] : memref<64xi32, #tpu.memory_space<smem>>
    %103 = arith.index_cast %102 : i32 to index
    %c0_43 = arith.constant 0 : index
    %104 = vector.load %arg2[%103, %c0_43] : memref<50x128xf32, #tpu.memory_space<vmem>>, vector<1x128xf32>
    %c14 = arith.constant 14 : index
    %c0_44 = arith.constant 0 : index
    %105 = vector.load %arg8[%c14, %c0_44] : memref<16x512xf32, #tpu.memory_space<vmem>>, vector<1x128xf32>
    tpu.vector_store %arg8[%c14, %c0_44], %104 {strides = array<i32>} : memref<16x512xf32, #tpu.memory_space<vmem>>, vector<1x128xf32>,
    %c0_i32_45 = arith.constant 0 : i32
    %106 = arith.addi %0, %c0_i32_45 : i32
    %c15_i32 = arith.constant 15 : i32
    %107 = arith.addi %106, %c15_i32 : i32
    %108 = arith.index_cast %107 : i32 to index
    %109 = memref.load %arg1[%108] : memref<64xi32, #tpu.memory_space<smem>>
    %110 = arith.index_cast %109 : i32 to index
    %c0_46 = arith.constant 0 : index
    %111 = vector.load %arg2[%110, %c0_46] : memref<50x128xf32, #tpu.memory_space<vmem>>, vector<1x128xf32>
    %c15 = arith.constant 15 : index
    %c0_47 = arith.constant 0 : index
    %112 = vector.load %arg8[%c15, %c0_47] : memref<16x512xf32, #tpu.memory_space<vmem>>, vector<1x128xf32>
    tpu.vector_store %arg8[%c15, %c0_47], %111 {strides = array<i32>} : memref<16x512xf32, #tpu.memory_space<vmem>>, vector<1x128xf32>,
    %c16_i32 = arith.constant 16 : i32
    %113 = arith.addi %0, %c16_i32 : i32
    %c0_i32_48 = arith.constant 0 : i32
    %114 = arith.addi %113, %c0_i32_48 : i32
    %115 = arith.index_cast %114 : i32 to index
    %116 = memref.load %arg1[%115] : memref<64xi32, #tpu.memory_space<smem>>
    %117 = arith.index_cast %116 : i32 to index
    %c0_49 = arith.constant 0 : index
    %118 = vector.load %arg2[%117, %c0_49] : memref<50x128xf32, #tpu.memory_space<vmem>>, vector<1x128xf32>
    %c0_50 = arith.constant 0 : index
    %c128 = arith.constant 128 : index
    %119 = vector.load %arg8[%c0_50, %c128] : memref<16x512xf32, #tpu.memory_space<vmem>>, vector<1x128xf32>
    tpu.vector_store %arg8[%c0_50, %c128], %118 {strides = array<i32>} : memref<16x512xf32, #tpu.memory_space<vmem>>, vector<1x128xf32>,
    %c16_i32_51 = arith.constant 16 : i32
    %120 = arith.addi %0, %c16_i32_51 : i32
    %c1_i32_52 = arith.constant 1 : i32
    %121 = arith.addi %120, %c1_i32_52 : i32
    %122 = arith.index_cast %121 : i32 to index
    %123 = memref.load %arg1[%122] : memref<64xi32, #tpu.memory_space<smem>>
    %124 = arith.index_cast %123 : i32 to index
    %c0_53 = arith.constant 0 : index
    %125 = vector.load %arg2[%124, %c0_53] : memref<50x128xf32, #tpu.memory_space<vmem>>, vector<1x128xf32>
    %c1_54 = arith.constant 1 : index
    %c128_55 = arith.constant 128 : index
    %126 = vector.load %arg8[%c1_54, %c128_55] : memref<16x512xf32, #tpu.memory_space<vmem>>, vector<1x128xf32>
    tpu.vector_store %arg8[%c1_54, %c128_55], %125 {strides = array<i32>} : memref<16x512xf32, #tpu.memory_space<vmem>>, vector<1x128xf32>,
    %c16_i32_56 = arith.constant 16 : i32
    %127 = arith.addi %0, %c16_i32_56 : i32
    %c2_i32_57 = arith.constant 2 : i32
    %128 = arith.addi %127, %c2_i32_57 : i32
    %129 = arith.index_cast %128 : i32 to index
    %130 = memref.load %arg1[%129] : memref<64xi32, #tpu.memory_space<smem>>
    %131 = arith.index_cast %130 : i32 to index
    %c0_58 = arith.constant 0 : index
    %132 = vector.load %arg2[%131, %c0_58] : memref<50x128xf32, #tpu.memory_space<vmem>>, vector<1x128xf32>
    %c2_59 = arith.constant 2 : index
    %c128_60 = arith.constant 128 : index
    %133 = vector.load %arg8[%c2_59, %c128_60] : memref<16x512xf32, #tpu.memory_space<vmem>>, vector<1x128xf32>
    tpu.vector_store %arg8[%c2_59, %c128_60], %132 {strides = array<i32>} : memref<16x512xf32, #tpu.memory_space<vmem>>, vector<1x128xf32>,
    %c16_i32_61 = arith.constant 16 : i32
    %134 = arith.addi %0, %c16_i32_61 : i32
    %c3_i32_62 = arith.constant 3 : i32
    %135 = arith.addi %134, %c3_i32_62 : i32
    %136 = arith.index_cast %135 : i32 to index
    %137 = memref.load %arg1[%136] : memref<64xi32, #tpu.memory_space<smem>>
    %138 = arith.index_cast %137 : i32 to index
    %c0_63 = arith.constant 0 : index
    %139 = vector.load %arg2[%138, %c0_63] : memref<50x128xf32, #tpu.memory_space<vmem>>, vector<1x128xf32>
    %c3_64 = arith.constant 3 : index
    %c128_65 = arith.constant 128 : index
    %140 = vector.load %arg8[%c3_64, %c128_65] : memref<16x512xf32, #tpu.memory_space<vmem>>, vector<1x128xf32>
    tpu.vector_store %arg8[%c3_64, %c128_65], %139 {strides = array<i32>} : memref<16x512xf32, #tpu.memory_space<vmem>>, vector<1x128xf32>,
    %c16_i32_66 = arith.constant 16 : i32
    %141 = arith.addi %0, %c16_i32_66 : i32
    %c4_i32_67 = arith.constant 4 : i32
    %142 = arith.addi %141, %c4_i32_67 : i32
    %143 = arith.index_cast %142 : i32 to index
    %144 = memref.load %arg1[%143] : memref<64xi32, #tpu.memory_space<smem>>
    %145 = arith.index_cast %144 : i32 to index
    %c0_68 = arith.constant 0 : index
    %146 = vector.load %arg2[%145, %c0_68] : memref<50x128xf32, #tpu.memory_space<vmem>>, vector<1x128xf32>
    %c4_69 = arith.constant 4 : index
    %c128_70 = arith.constant 128 : index
    %147 = vector.load %arg8[%c4_69, %c128_70] : memref<16x512xf32, #tpu.memory_space<vmem>>, vector<1x128xf32>
    tpu.vector_store %arg8[%c4_69, %c128_70], %146 {strides = array<i32>} : memref<16x512xf32, #tpu.memory_space<vmem>>, vector<1x128xf32>,
    %c16_i32_71 = arith.constant 16 : i32
    %148 = arith.addi %0, %c16_i32_71 : i32
    %c5_i32_72 = arith.constant 5 : i32
    %149 = arith.addi %148, %c5_i32_72 : i32
    %150 = arith.index_cast %149 : i32 to index
    %151 = memref.load %arg1[%150] : memref<64xi32, #tpu.memory_space<smem>>
    %152 = arith.index_cast %151 : i32 to index
    %c0_73 = arith.constant 0 : index
    %153 = vector.load %arg2[%152, %c0_73] : memref<50x128xf32, #tpu.memory_space<vmem>>, vector<1x128xf32>
    %c5_74 = arith.constant 5 : index
    %c128_75 = arith.constant 128 : index
    %154 = vector.load %arg8[%c5_74, %c128_75] : memref<16x512xf32, #tpu.memory_space<vmem>>, vector<1x128xf32>
    tpu.vector_store %arg8[%c5_74, %c128_75], %153 {strides = array<i32>} : memref<16x512xf32, #tpu.memory_space<vmem>>, vector<1x128xf32>,
    %c16_i32_76 = arith.constant 16 : i32
    %155 = arith.addi %0, %c16_i32_76 : i32
    %c6_i32_77 = arith.constant 6 : i32
    %156 = arith.addi %155, %c6_i32_77 : i32
    %157 = arith.index_cast %156 : i32 to index
    %158 = memref.load %arg1[%157] : memref<64xi32, #tpu.memory_space<smem>>
    %159 = arith.index_cast %158 : i32 to index
    %c0_78 = arith.constant 0 : index
    %160 = vector.load %arg2[%159, %c0_78] : memref<50x128xf32, #tpu.memory_space<vmem>>, vector<1x128xf32>
    %c6_79 = arith.constant 6 : index
    %c128_80 = arith.constant 128 : index
    %161 = vector.load %arg8[%c6_79, %c128_80] : memref<16x512xf32, #tpu.memory_space<vmem>>, vector<1x128xf32>
    tpu.vector_store %arg8[%c6_79, %c128_80], %160 {strides = array<i32>} : memref<16x512xf32, #tpu.memory_space<vmem>>, vector<1x128xf32>,
    %c16_i32_81 = arith.constant 16 : i32
    %162 = arith.addi %0, %c16_i32_81 : i32
    %c7_i32_82 = arith.constant 7 : i32
    %163 = arith.addi %162, %c7_i32_82 : i32
    %164 = arith.index_cast %163 : i32 to index
    %165 = memref.load %arg1[%164] : memref<64xi32, #tpu.memory_space<smem>>
    %166 = arith.index_cast %165 : i32 to index
    %c0_83 = arith.constant 0 : index
    %167 = vector.load %arg2[%166, %c0_83] : memref<50x128xf32, #tpu.memory_space<vmem>>, vector<1x128xf32>
    %c7_84 = arith.constant 7 : index
    %c128_85 = arith.constant 128 : index
    %168 = vector.load %arg8[%c7_84, %c128_85] : memref<16x512xf32, #tpu.memory_space<vmem>>, vector<1x128xf32>
    tpu.vector_store %arg8[%c7_84, %c128_85], %167 {strides = array<i32>} : memref<16x512xf32, #tpu.memory_space<vmem>>, vector<1x128xf32>,
    %c16_i32_86 = arith.constant 16 : i32
    %169 = arith.addi %0, %c16_i32_86 : i32
    %c8_i32_87 = arith.constant 8 : i32
    %170 = arith.addi %169, %c8_i32_87 : i32
    %171 = arith.index_cast %170 : i32 to index
    %172 = memref.load %arg1[%171] : memref<64xi32, #tpu.memory_space<smem>>
    %173 = arith.index_cast %172 : i32 to index
    %c0_88 = arith.constant 0 : index
    %174 = vector.load %arg2[%173, %c0_88] : memref<50x128xf32, #tpu.memory_space<vmem>>, vector<1x128xf32>
    %c8_89 = arith.constant 8 : index
    %c128_90 = arith.constant 128 : index
    %175 = vector.load %arg8[%c8_89, %c128_90] : memref<16x512xf32, #tpu.memory_space<vmem>>, vector<1x128xf32>
    tpu.vector_store %arg8[%c8_89, %c128_90], %174 {strides = array<i32>} : memref<16x512xf32, #tpu.memory_space<vmem>>, vector<1x128xf32>,
    %c16_i32_91 = arith.constant 16 : i32
    %176 = arith.addi %0, %c16_i32_91 : i32
    %c9_i32_92 = arith.constant 9 : i32
    %177 = arith.addi %176, %c9_i32_92 : i32
    %178 = arith.index_cast %177 : i32 to index
    %179 = memref.load %arg1[%178] : memref<64xi32, #tpu.memory_space<smem>>
    %180 = arith.index_cast %179 : i32 to index
    %c0_93 = arith.constant 0 : index
    %181 = vector.load %arg2[%180, %c0_93] : memref<50x128xf32, #tpu.memory_space<vmem>>, vector<1x128xf32>
    %c9_94 = arith.constant 9 : index
    %c128_95 = arith.constant 128 : index
    %182 = vector.load %arg8[%c9_94, %c128_95] : memref<16x512xf32, #tpu.memory_space<vmem>>, vector<1x128xf32>
    tpu.vector_store %arg8[%c9_94, %c128_95], %181 {strides = array<i32>} : memref<16x512xf32, #tpu.memory_space<vmem>>, vector<1x128xf32>,
    %c16_i32_96 = arith.constant 16 : i32
    %183 = arith.addi %0, %c16_i32_96 : i32
    %c10_i32_97 = arith.constant 10 : i32
    %184 = arith.addi %183, %c10_i32_97 : i32
    %185 = arith.index_cast %184 : i32 to index
    %186 = memref.load %arg1[%185] : memref<64xi32, #tpu.memory_space<smem>>
    %187 = arith.index_cast %186 : i32 to index
    %c0_98 = arith.constant 0 : index
    %188 = vector.load %arg2[%187, %c0_98] : memref<50x128xf32, #tpu.memory_space<vmem>>, vector<1x128xf32>
    %c10_99 = arith.constant 10 : index
    %c128_100 = arith.constant 128 : index
    %189 = vector.load %arg8[%c10_99, %c128_100] : memref<16x512xf32, #tpu.memory_space<vmem>>, vector<1x128xf32>
    tpu.vector_store %arg8[%c10_99, %c128_100], %188 {strides = array<i32>} : memref<16x512xf32, #tpu.memory_space<vmem>>, vector<1x128xf32>,
    %c16_i32_101 = arith.constant 16 : i32
    %190 = arith.addi %0, %c16_i32_101 : i32
    %c11_i32_102 = arith.constant 11 : i32
    %191 = arith.addi %190, %c11_i32_102 : i32
    %192 = arith.index_cast %191 : i32 to index
    %193 = memref.load %arg1[%192] : memref<64xi32, #tpu.memory_space<smem>>
    %194 = arith.index_cast %193 : i32 to index
    %c0_103 = arith.constant 0 : index
    %195 = vector.load %arg2[%194, %c0_103] : memref<50x128xf32, #tpu.memory_space<vmem>>, vector<1x128xf32>
    %c11_104 = arith.constant 11 : index
    %c128_105 = arith.constant 128 : index
    %196 = vector.load %arg8[%c11_104, %c128_105] : memref<16x512xf32, #tpu.memory_space<vmem>>, vector<1x128xf32>
    tpu.vector_store %arg8[%c11_104, %c128_105], %195 {strides = array<i32>} : memref<16x512xf32, #tpu.memory_space<vmem>>, vector<1x128xf32>,
    %c16_i32_106 = arith.constant 16 : i32
    %197 = arith.addi %0, %c16_i32_106 : i32
    %c12_i32_107 = arith.constant 12 : i32
    %198 = arith.addi %197, %c12_i32_107 : i32
    %199 = arith.index_cast %198 : i32 to index
    %200 = memref.load %arg1[%199] : memref<64xi32, #tpu.memory_space<smem>>
    %201 = arith.index_cast %200 : i32 to index
    %c0_108 = arith.constant 0 : index
    %202 = vector.load %arg2[%201, %c0_108] : memref<50x128xf32, #tpu.memory_space<vmem>>, vector<1x128xf32>
    %c12_109 = arith.constant 12 : index
    %c128_110 = arith.constant 128 : index
    %203 = vector.load %arg8[%c12_109, %c128_110] : memref<16x512xf32, #tpu.memory_space<vmem>>, vector<1x128xf32>
    tpu.vector_store %arg8[%c12_109, %c128_110], %202 {strides = array<i32>} : memref<16x512xf32, #tpu.memory_space<vmem>>, vector<1x128xf32>,
    %c16_i32_111 = arith.constant 16 : i32
    %204 = arith.addi %0, %c16_i32_111 : i32
    %c13_i32_112 = arith.constant 13 : i32
    %205 = arith.addi %204, %c13_i32_112 : i32
    %206 = arith.index_cast %205 : i32 to index
    %207 = memref.load %arg1[%206] : memref<64xi32, #tpu.memory_space<smem>>
    %208 = arith.index_cast %207 : i32 to index
    %c0_113 = arith.constant 0 : index
    %209 = vector.load %arg2[%208, %c0_113] : memref<50x128xf32, #tpu.memory_space<vmem>>, vector<1x128xf32>
    %c13_114 = arith.constant 13 : index
    %c128_115 = arith.constant 128 : index
    %210 = vector.load %arg8[%c13_114, %c128_115] : memref<16x512xf32, #tpu.memory_space<vmem>>, vector<1x128xf32>
    tpu.vector_store %arg8[%c13_114, %c128_115], %209 {strides = array<i32>} : memref<16x512xf32, #tpu.memory_space<vmem>>, vector<1x128xf32>,
    %c16_i32_116 = arith.constant 16 : i32
    %211 = arith.addi %0, %c16_i32_116 : i32
    %c14_i32_117 = arith.constant 14 : i32
    %212 = arith.addi %211, %c14_i32_117 : i32
    %213 = arith.index_cast %212 : i32 to index
    %214 = memref.load %arg1[%213] : memref<64xi32, #tpu.memory_space<smem>>
    %215 = arith.index_cast %214 : i32 to index
    %c0_118 = arith.constant 0 : index
    %216 = vector.load %arg2[%215, %c0_118] : memref<50x128xf32, #tpu.memory_space<vmem>>, vector<1x128xf32>
    %c14_119 = arith.constant 14 : index
    %c128_120 = arith.constant 128 : index
    %217 = vector.load %arg8[%c14_119, %c128_120] : memref<16x512xf32, #tpu.memory_space<vmem>>, vector<1x128xf32>
    tpu.vector_store %arg8[%c14_119, %c128_120], %216 {strides = array<i32>} : memref<16x512xf32, #tpu.memory_space<vmem>>, vector<1x128xf32>,
    %c16_i32_121 = arith.constant 16 : i32
    %218 = arith.addi %0, %c16_i32_121 : i32
    %c15_i32_122 = arith.constant 15 : i32
    %219 = arith.addi %218, %c15_i32_122 : i32
    %220 = arith.index_cast %219 : i32 to index
    %221 = memref.load %arg1[%220] : memref<64xi32, #tpu.memory_space<smem>>
    %222 = arith.index_cast %221 : i32 to index
    %c0_123 = arith.constant 0 : index
    %223 = vector.load %arg2[%222, %c0_123] : memref<50x128xf32, #tpu.memory_space<vmem>>, vector<1x128xf32>
    %c15_124 = arith.constant 15 : index
    %c128_125 = arith.constant 128 : index
    %224 = vector.load %arg8[%c15_124, %c128_125] : memref<16x512xf32, #tpu.memory_space<vmem>>, vector<1x128xf32>
    tpu.vector_store %arg8[%c15_124, %c128_125], %223 {strides = array<i32>} : memref<16x512xf32, #tpu.memory_space<vmem>>, vector<1x128xf32>,
    %c32_i32 = arith.constant 32 : i32
    %225 = arith.addi %0, %c32_i32 : i32
    %c0_i32_126 = arith.constant 0 : i32
    %226 = arith.addi %225, %c0_i32_126 : i32
    %227 = arith.index_cast %226 : i32 to index
    %228 = memref.load %arg1[%227] : memref<64xi32, #tpu.memory_space<smem>>
    %229 = arith.index_cast %228 : i32 to index
    %c0_127 = arith.constant 0 : index
    %230 = vector.load %arg2[%229, %c0_127] : memref<50x128xf32, #tpu.memory_space<vmem>>, vector<1x128xf32>
    %c0_128 = arith.constant 0 : index
    %c256 = arith.constant 256 : index
    %231 = vector.load %arg8[%c0_128, %c256] : memref<16x512xf32, #tpu.memory_space<vmem>>, vector<1x128xf32>
    tpu.vector_store %arg8[%c0_128, %c256], %230 {strides = array<i32>} : memref<16x512xf32, #tpu.memory_space<vmem>>, vector<1x128xf32>,
    %c32_i32_129 = arith.constant 32 : i32
    %232 = arith.addi %0, %c32_i32_129 : i32
    %c1_i32_130 = arith.constant 1 : i32
    %233 = arith.addi %232, %c1_i32_130 : i32
    %234 = arith.index_cast %233 : i32 to index
    %235 = memref.load %arg1[%234] : memref<64xi32, #tpu.memory_space<smem>>
    %236 = arith.index_cast %235 : i32 to index
    %c0_131 = arith.constant 0 : index
    %237 = vector.load %arg2[%236, %c0_131] : memref<50x128xf32, #tpu.memory_space<vmem>>, vector<1x128xf32>
    %c1_132 = arith.constant 1 : index
    %c256_133 = arith.constant 256 : index
    %238 = vector.load %arg8[%c1_132, %c256_133] : memref<16x512xf32, #tpu.memory_space<vmem>>, vector<1x128xf32>
    tpu.vector_store %arg8[%c1_132, %c256_133], %237 {strides = array<i32>} : memref<16x512xf32, #tpu.memory_space<vmem>>, vector<1x128xf32>,
    %c32_i32_134 = arith.constant 32 : i32
    %239 = arith.addi %0, %c32_i32_134 : i32
    %c2_i32_135 = arith.constant 2 : i32
    %240 = arith.addi %239, %c2_i32_135 : i32
    %241 = arith.index_cast %240 : i32 to index
    %242 = memref.load %arg1[%241] : memref<64xi32, #tpu.memory_space<smem>>
    %243 = arith.index_cast %242 : i32 to index
    %c0_136 = arith.constant 0 : index
    %244 = vector.load %arg2[%243, %c0_136] : memref<50x128xf32, #tpu.memory_space<vmem>>, vector<1x128xf32>
    %c2_137 = arith.constant 2 : index
    %c256_138 = arith.constant 256 : index
    %245 = vector.load %arg8[%c2_137, %c256_138] : memref<16x512xf32, #tpu.memory_space<vmem>>, vector<1x128xf32>
    tpu.vector_store %arg8[%c2_137, %c256_138], %244 {strides = array<i32>} : memref<16x512xf32, #tpu.memory_space<vmem>>, vector<1x128xf32>,
    %c32_i32_139 = arith.constant 32 : i32
    %246 = arith.addi %0, %c32_i32_139 : i32
    %c3_i32_140 = arith.constant 3 : i32
    %247 = arith.addi %246, %c3_i32_140 : i32
    %248 = arith.index_cast %247 : i32 to index
    %249 = memref.load %arg1[%248] : memref<64xi32, #tpu.memory_space<smem>>
    %250 = arith.index_cast %249 : i32 to index
    %c0_141 = arith.constant 0 : index
    %251 = vector.load %arg2[%250, %c0_141] : memref<50x128xf32, #tpu.memory_space<vmem>>, vector<1x128xf32>
    %c3_142 = arith.constant 3 : index
    %c256_143 = arith.constant 256 : index
    %252 = vector.load %arg8[%c3_142, %c256_143] : memref<16x512xf32, #tpu.memory_space<vmem>>, vector<1x128xf32>
    tpu.vector_store %arg8[%c3_142, %c256_143], %251 {strides = array<i32>} : memref<16x512xf32, #tpu.memory_space<vmem>>, vector<1x128xf32>,
    %c32_i32_144 = arith.constant 32 : i32
    %253 = arith.addi %0, %c32_i32_144 : i32
    %c4_i32_145 = arith.constant 4 : i32
    %254 = arith.addi %253, %c4_i32_145 : i32
    %255 = arith.index_cast %254 : i32 to index
    %256 = memref.load %arg1[%255] : memref<64xi32, #tpu.memory_space<smem>>
    %257 = arith.index_cast %256 : i32 to index
    %c0_146 = arith.constant 0 : index
    %258 = vector.load %arg2[%257, %c0_146] : memref<50x128xf32, #tpu.memory_space<vmem>>, vector<1x128xf32>
    %c4_147 = arith.constant 4 : index
    %c256_148 = arith.constant 256 : index
    %259 = vector.load %arg8[%c4_147, %c256_148] : memref<16x512xf32, #tpu.memory_space<vmem>>, vector<1x128xf32>
    tpu.vector_store %arg8[%c4_147, %c256_148], %258 {strides = array<i32>} : memref<16x512xf32, #tpu.memory_space<vmem>>, vector<1x128xf32>,
    %c32_i32_149 = arith.constant 32 : i32
    %260 = arith.addi %0, %c32_i32_149 : i32
    %c5_i32_150 = arith.constant 5 : i32
    %261 = arith.addi %260, %c5_i32_150 : i32
    %262 = arith.index_cast %261 : i32 to index
    %263 = memref.load %arg1[%262] : memref<64xi32, #tpu.memory_space<smem>>
    %264 = arith.index_cast %263 : i32 to index
    %c0_151 = arith.constant 0 : index
    %265 = vector.load %arg2[%264, %c0_151] : memref<50x128xf32, #tpu.memory_space<vmem>>, vector<1x128xf32>
    %c5_152 = arith.constant 5 : index
    %c256_153 = arith.constant 256 : index
    %266 = vector.load %arg8[%c5_152, %c256_153] : memref<16x512xf32, #tpu.memory_space<vmem>>, vector<1x128xf32>
    tpu.vector_store %arg8[%c5_152, %c256_153], %265 {strides = array<i32>} : memref<16x512xf32, #tpu.memory_space<vmem>>, vector<1x128xf32>,
    %c32_i32_154 = arith.constant 32 : i32
    %267 = arith.addi %0, %c32_i32_154 : i32
    %c6_i32_155 = arith.constant 6 : i32
    %268 = arith.addi %267, %c6_i32_155 : i32
    %269 = arith.index_cast %268 : i32 to index
    %270 = memref.load %arg1[%269] : memref<64xi32, #tpu.memory_space<smem>>
    %271 = arith.index_cast %270 : i32 to index
    %c0_156 = arith.constant 0 : index
    %272 = vector.load %arg2[%271, %c0_156] : memref<50x128xf32, #tpu.memory_space<vmem>>, vector<1x128xf32>
    %c6_157 = arith.constant 6 : index
    %c256_158 = arith.constant 256 : index
    %273 = vector.load %arg8[%c6_157, %c256_158] : memref<16x512xf32, #tpu.memory_space<vmem>>, vector<1x128xf32>
    tpu.vector_store %arg8[%c6_157, %c256_158], %272 {strides = array<i32>} : memref<16x512xf32, #tpu.memory_space<vmem>>, vector<1x128xf32>,
    %c32_i32_159 = arith.constant 32 : i32
    %274 = arith.addi %0, %c32_i32_159 : i32
    %c7_i32_160 = arith.constant 7 : i32
    %275 = arith.addi %274, %c7_i32_160 : i32
    %276 = arith.index_cast %275 : i32 to index
    %277 = memref.load %arg1[%276] : memref<64xi32, #tpu.memory_space<smem>>
    %278 = arith.index_cast %277 : i32 to index
    %c0_161 = arith.constant 0 : index
    %279 = vector.load %arg2[%278, %c0_161] : memref<50x128xf32, #tpu.memory_space<vmem>>, vector<1x128xf32>
    %c7_162 = arith.constant 7 : index
    %c256_163 = arith.constant 256 : index
    %280 = vector.load %arg8[%c7_162, %c256_163] : memref<16x512xf32, #tpu.memory_space<vmem>>, vector<1x128xf32>
    tpu.vector_store %arg8[%c7_162, %c256_163], %279 {strides = array<i32>} : memref<16x512xf32, #tpu.memory_space<vmem>>, vector<1x128xf32>,
    %c32_i32_164 = arith.constant 32 : i32
    %281 = arith.addi %0, %c32_i32_164 : i32
    %c8_i32_165 = arith.constant 8 : i32
    %282 = arith.addi %281, %c8_i32_165 : i32
    %283 = arith.index_cast %282 : i32 to index
    %284 = memref.load %arg1[%283] : memref<64xi32, #tpu.memory_space<smem>>
    %285 = arith.index_cast %284 : i32 to index
    %c0_166 = arith.constant 0 : index
    %286 = vector.load %arg2[%285, %c0_166] : memref<50x128xf32, #tpu.memory_space<vmem>>, vector<1x128xf32>
    %c8_167 = arith.constant 8 : index
    %c256_168 = arith.constant 256 : index
    %287 = vector.load %arg8[%c8_167, %c256_168] : memref<16x512xf32, #tpu.memory_space<vmem>>, vector<1x128xf32>
    tpu.vector_store %arg8[%c8_167, %c256_168], %286 {strides = array<i32>} : memref<16x512xf32, #tpu.memory_space<vmem>>, vector<1x128xf32>,
    %c32_i32_169 = arith.constant 32 : i32
    %288 = arith.addi %0, %c32_i32_169 : i32
    %c9_i32_170 = arith.constant 9 : i32
    %289 = arith.addi %288, %c9_i32_170 : i32
    %290 = arith.index_cast %289 : i32 to index
    %291 = memref.load %arg1[%290] : memref<64xi32, #tpu.memory_space<smem>>
    %292 = arith.index_cast %291 : i32 to index
    %c0_171 = arith.constant 0 : index
    %293 = vector.load %arg2[%292, %c0_171] : memref<50x128xf32, #tpu.memory_space<vmem>>, vector<1x128xf32>
    %c9_172 = arith.constant 9 : index
    %c256_173 = arith.constant 256 : index
    %294 = vector.load %arg8[%c9_172, %c256_173] : memref<16x512xf32, #tpu.memory_space<vmem>>, vector<1x128xf32>
    tpu.vector_store %arg8[%c9_172, %c256_173], %293 {strides = array<i32>} : memref<16x512xf32, #tpu.memory_space<vmem>>, vector<1x128xf32>,
    %c32_i32_174 = arith.constant 32 : i32
    %295 = arith.addi %0, %c32_i32_174 : i32
    %c10_i32_175 = arith.constant 10 : i32
    %296 = arith.addi %295, %c10_i32_175 : i32
    %297 = arith.index_cast %296 : i32 to index
    %298 = memref.load %arg1[%297] : memref<64xi32, #tpu.memory_space<smem>>
    %299 = arith.index_cast %298 : i32 to index
    %c0_176 = arith.constant 0 : index
    %300 = vector.load %arg2[%299, %c0_176] : memref<50x128xf32, #tpu.memory_space<vmem>>, vector<1x128xf32>
    %c10_177 = arith.constant 10 : index
    %c256_178 = arith.constant 256 : index
    %301 = vector.load %arg8[%c10_177, %c256_178] : memref<16x512xf32, #tpu.memory_space<vmem>>, vector<1x128xf32>
    tpu.vector_store %arg8[%c10_177, %c256_178], %300 {strides = array<i32>} : memref<16x512xf32, #tpu.memory_space<vmem>>, vector<1x128xf32>,
    %c32_i32_179 = arith.constant 32 : i32
    %302 = arith.addi %0, %c32_i32_179 : i32
    %c11_i32_180 = arith.constant 11 : i32
    %303 = arith.addi %302, %c11_i32_180 : i32
    %304 = arith.index_cast %303 : i32 to index
    %305 = memref.load %arg1[%304] : memref<64xi32, #tpu.memory_space<smem>>
    %306 = arith.index_cast %305 : i32 to index
    %c0_181 = arith.constant 0 : index
    %307 = vector.load %arg2[%306, %c0_181] : memref<50x128xf32, #tpu.memory_space<vmem>>, vector<1x128xf32>
    %c11_182 = arith.constant 11 : index
    %c256_183 = arith.constant 256 : index
    %308 = vector.load %arg8[%c11_182, %c256_183] : memref<16x512xf32, #tpu.memory_space<vmem>>, vector<1x128xf32>
    tpu.vector_store %arg8[%c11_182, %c256_183], %307 {strides = array<i32>} : memref<16x512xf32, #tpu.memory_space<vmem>>, vector<1x128xf32>,
    %c32_i32_184 = arith.constant 32 : i32
    %309 = arith.addi %0, %c32_i32_184 : i32
    %c12_i32_185 = arith.constant 12 : i32
    %310 = arith.addi %309, %c12_i32_185 : i32
    %311 = arith.index_cast %310 : i32 to index
    %312 = memref.load %arg1[%311] : memref<64xi32, #tpu.memory_space<smem>>
    %313 = arith.index_cast %312 : i32 to index
    %c0_186 = arith.constant 0 : index
    %314 = vector.load %arg2[%313, %c0_186] : memref<50x128xf32, #tpu.memory_space<vmem>>, vector<1x128xf32>
    %c12_187 = arith.constant 12 : index
    %c256_188 = arith.constant 256 : index
    %315 = vector.load %arg8[%c12_187, %c256_188] : memref<16x512xf32, #tpu.memory_space<vmem>>, vector<1x128xf32>
    tpu.vector_store %arg8[%c12_187, %c256_188], %314 {strides = array<i32>} : memref<16x512xf32, #tpu.memory_space<vmem>>, vector<1x128xf32>,
    %c32_i32_189 = arith.constant 32 : i32
    %316 = arith.addi %0, %c32_i32_189 : i32
    %c13_i32_190 = arith.constant 13 : i32
    %317 = arith.addi %316, %c13_i32_190 : i32
    %318 = arith.index_cast %317 : i32 to index
    %319 = memref.load %arg1[%318] : memref<64xi32, #tpu.memory_space<smem>>
    %320 = arith.index_cast %319 : i32 to index
    %c0_191 = arith.constant 0 : index
    %321 = vector.load %arg2[%320, %c0_191] : memref<50x128xf32, #tpu.memory_space<vmem>>, vector<1x128xf32>
    %c13_192 = arith.constant 13 : index
    %c256_193 = arith.constant 256 : index
    %322 = vector.load %arg8[%c13_192, %c256_193] : memref<16x512xf32, #tpu.memory_space<vmem>>, vector<1x128xf32>
    tpu.vector_store %arg8[%c13_192, %c256_193], %321 {strides = array<i32>} : memref<16x512xf32, #tpu.memory_space<vmem>>, vector<1x128xf32>,
    %c32_i32_194 = arith.constant 32 : i32
    %323 = arith.addi %0, %c32_i32_194 : i32
    %c14_i32_195 = arith.constant 14 : i32
    %324 = arith.addi %323, %c14_i32_195 : i32
    %325 = arith.index_cast %324 : i32 to index
    %326 = memref.load %arg1[%325] : memref<64xi32, #tpu.memory_space<smem>>
    %327 = arith.index_cast %326 : i32 to index
    %c0_196 = arith.constant 0 : index
    %328 = vector.load %arg2[%327, %c0_196] : memref<50x128xf32, #tpu.memory_space<vmem>>, vector<1x128xf32>
    %c14_197 = arith.constant 14 : index
    %c256_198 = arith.constant 256 : index
    %329 = vector.load %arg8[%c14_197, %c256_198] : memref<16x512xf32, #tpu.memory_space<vmem>>, vector<1x128xf32>
    tpu.vector_store %arg8[%c14_197, %c256_198], %328 {strides = array<i32>} : memref<16x512xf32, #tpu.memory_space<vmem>>, vector<1x128xf32>,
    %c32_i32_199 = arith.constant 32 : i32
    %330 = arith.addi %0, %c32_i32_199 : i32
    %c15_i32_200 = arith.constant 15 : i32
    %331 = arith.addi %330, %c15_i32_200 : i32
    %332 = arith.index_cast %331 : i32 to index
    %333 = memref.load %arg1[%332] : memref<64xi32, #tpu.memory_space<smem>>
    %334 = arith.index_cast %333 : i32 to index
    %c0_201 = arith.constant 0 : index
    %335 = vector.load %arg2[%334, %c0_201] : memref<50x128xf32, #tpu.memory_space<vmem>>, vector<1x128xf32>
    %c15_202 = arith.constant 15 : index
    %c256_203 = arith.constant 256 : index
    %336 = vector.load %arg8[%c15_202, %c256_203] : memref<16x512xf32, #tpu.memory_space<vmem>>, vector<1x128xf32>
    tpu.vector_store %arg8[%c15_202, %c256_203], %335 {strides = array<i32>} : memref<16x512xf32, #tpu.memory_space<vmem>>, vector<1x128xf32>,
    %c48_i32 = arith.constant 48 : i32
    %337 = arith.addi %0, %c48_i32 : i32
    %c0_i32_204 = arith.constant 0 : i32
    %338 = arith.addi %337, %c0_i32_204 : i32
    %339 = arith.index_cast %338 : i32 to index
    %340 = memref.load %arg1[%339] : memref<64xi32, #tpu.memory_space<smem>>
    %341 = arith.index_cast %340 : i32 to index
    %c0_205 = arith.constant 0 : index
    %342 = vector.load %arg2[%341, %c0_205] : memref<50x128xf32, #tpu.memory_space<vmem>>, vector<1x128xf32>
    %c0_206 = arith.constant 0 : index
    %c384 = arith.constant 384 : index
    %343 = vector.load %arg8[%c0_206, %c384] : memref<16x512xf32, #tpu.memory_space<vmem>>, vector<1x128xf32>
    tpu.vector_store %arg8[%c0_206, %c384], %342 {strides = array<i32>} : memref<16x512xf32, #tpu.memory_space<vmem>>, vector<1x128xf32>,
    %c48_i32_207 = arith.constant 48 : i32
    %344 = arith.addi %0, %c48_i32_207 : i32
    %c1_i32_208 = arith.constant 1 : i32
    %345 = arith.addi %344, %c1_i32_208 : i32
    %346 = arith.index_cast %345 : i32 to index
    %347 = memref.load %arg1[%346] : memref<64xi32, #tpu.memory_space<smem>>
    %348 = arith.index_cast %347 : i32 to index
    %c0_209 = arith.constant 0 : index
    %349 = vector.load %arg2[%348, %c0_209] : memref<50x128xf32, #tpu.memory_space<vmem>>, vector<1x128xf32>
    %c1_210 = arith.constant 1 : index
    %c384_211 = arith.constant 384 : index
    %350 = vector.load %arg8[%c1_210, %c384_211] : memref<16x512xf32, #tpu.memory_space<vmem>>, vector<1x128xf32>
    tpu.vector_store %arg8[%c1_210, %c384_211], %349 {strides = array<i32>} : memref<16x512xf32, #tpu.memory_space<vmem>>, vector<1x128xf32>,
    %c48_i32_212 = arith.constant 48 : i32
    %351 = arith.addi %0, %c48_i32_212 : i32
    %c2_i32_213 = arith.constant 2 : i32
    %352 = arith.addi %351, %c2_i32_213 : i32
    %353 = arith.index_cast %352 : i32 to index
    %354 = memref.load %arg1[%353] : memref<64xi32, #tpu.memory_space<smem>>
    %355 = arith.index_cast %354 : i32 to index
    %c0_214 = arith.constant 0 : index
    %356 = vector.load %arg2[%355, %c0_214] : memref<50x128xf32, #tpu.memory_space<vmem>>, vector<1x128xf32>
    %c2_215 = arith.constant 2 : index
    %c384_216 = arith.constant 384 : index
    %357 = vector.load %arg8[%c2_215, %c384_216] : memref<16x512xf32, #tpu.memory_space<vmem>>, vector<1x128xf32>
    tpu.vector_store %arg8[%c2_215, %c384_216], %356 {strides = array<i32>} : memref<16x512xf32, #tpu.memory_space<vmem>>, vector<1x128xf32>,
    %c48_i32_217 = arith.constant 48 : i32
    %358 = arith.addi %0, %c48_i32_217 : i32
    %c3_i32_218 = arith.constant 3 : i32
    %359 = arith.addi %358, %c3_i32_218 : i32
    %360 = arith.index_cast %359 : i32 to index
    %361 = memref.load %arg1[%360] : memref<64xi32, #tpu.memory_space<smem>>
    %362 = arith.index_cast %361 : i32 to index
    %c0_219 = arith.constant 0 : index
    %363 = vector.load %arg2[%362, %c0_219] : memref<50x128xf32, #tpu.memory_space<vmem>>, vector<1x128xf32>
    %c3_220 = arith.constant 3 : index
    %c384_221 = arith.constant 384 : index
    %364 = vector.load %arg8[%c3_220, %c384_221] : memref<16x512xf32, #tpu.memory_space<vmem>>, vector<1x128xf32>
    tpu.vector_store %arg8[%c3_220, %c384_221], %363 {strides = array<i32>} : memref<16x512xf32, #tpu.memory_space<vmem>>, vector<1x128xf32>,
    %c48_i32_222 = arith.constant 48 : i32
    %365 = arith.addi %0, %c48_i32_222 : i32
    %c4_i32_223 = arith.constant 4 : i32
    %366 = arith.addi %365, %c4_i32_223 : i32
    %367 = arith.index_cast %366 : i32 to index
    %368 = memref.load %arg1[%367] : memref<64xi32, #tpu.memory_space<smem>>
    %369 = arith.index_cast %368 : i32 to index
    %c0_224 = arith.constant 0 : index
    %370 = vector.load %arg2[%369, %c0_224] : memref<50x128xf32, #tpu.memory_space<vmem>>, vector<1x128xf32>
    %c4_225 = arith.constant 4 : index
    %c384_226 = arith.constant 384 : index
    %371 = vector.load %arg8[%c4_225, %c384_226] : memref<16x512xf32, #tpu.memory_space<vmem>>, vector<1x128xf32>
    tpu.vector_store %arg8[%c4_225, %c384_226], %370 {strides = array<i32>} : memref<16x512xf32, #tpu.memory_space<vmem>>, vector<1x128xf32>,
    %c48_i32_227 = arith.constant 48 : i32
    %372 = arith.addi %0, %c48_i32_227 : i32
    %c5_i32_228 = arith.constant 5 : i32
    %373 = arith.addi %372, %c5_i32_228 : i32
    %374 = arith.index_cast %373 : i32 to index
    %375 = memref.load %arg1[%374] : memref<64xi32, #tpu.memory_space<smem>>
    %376 = arith.index_cast %375 : i32 to index
    %c0_229 = arith.constant 0 : index
    %377 = vector.load %arg2[%376, %c0_229] : memref<50x128xf32, #tpu.memory_space<vmem>>, vector<1x128xf32>
    %c5_230 = arith.constant 5 : index
    %c384_231 = arith.constant 384 : index
    %378 = vector.load %arg8[%c5_230, %c384_231] : memref<16x512xf32, #tpu.memory_space<vmem>>, vector<1x128xf32>
    tpu.vector_store %arg8[%c5_230, %c384_231], %377 {strides = array<i32>} : memref<16x512xf32, #tpu.memory_space<vmem>>, vector<1x128xf32>,
    %c48_i32_232 = arith.constant 48 : i32
    %379 = arith.addi %0, %c48_i32_232 : i32
    %c6_i32_233 = arith.constant 6 : i32
    %380 = arith.addi %379, %c6_i32_233 : i32
    %381 = arith.index_cast %380 : i32 to index
    %382 = memref.load %arg1[%381] : memref<64xi32, #tpu.memory_space<smem>>
    %383 = arith.index_cast %382 : i32 to index
    %c0_234 = arith.constant 0 : index
    %384 = vector.load %arg2[%383, %c0_234] : memref<50x128xf32, #tpu.memory_space<vmem>>, vector<1x128xf32>
    %c6_235 = arith.constant 6 : index
    %c384_236 = arith.constant 384 : index
    %385 = vector.load %arg8[%c6_235, %c384_236] : memref<16x512xf32, #tpu.memory_space<vmem>>, vector<1x128xf32>
    tpu.vector_store %arg8[%c6_235, %c384_236], %384 {strides = array<i32>} : memref<16x512xf32, #tpu.memory_space<vmem>>, vector<1x128xf32>,
    %c48_i32_237 = arith.constant 48 : i32
    %386 = arith.addi %0, %c48_i32_237 : i32
    %c7_i32_238 = arith.constant 7 : i32
    %387 = arith.addi %386, %c7_i32_238 : i32
    %388 = arith.index_cast %387 : i32 to index
    %389 = memref.load %arg1[%388] : memref<64xi32, #tpu.memory_space<smem>>
    %390 = arith.index_cast %389 : i32 to index
    %c0_239 = arith.constant 0 : index
    %391 = vector.load %arg2[%390, %c0_239] : memref<50x128xf32, #tpu.memory_space<vmem>>, vector<1x128xf32>
    %c7_240 = arith.constant 7 : index
    %c384_241 = arith.constant 384 : index
    %392 = vector.load %arg8[%c7_240, %c384_241] : memref<16x512xf32, #tpu.memory_space<vmem>>, vector<1x128xf32>
    tpu.vector_store %arg8[%c7_240, %c384_241], %391 {strides = array<i32>} : memref<16x512xf32, #tpu.memory_space<vmem>>, vector<1x128xf32>,
    %c48_i32_242 = arith.constant 48 : i32
    %393 = arith.addi %0, %c48_i32_242 : i32
    %c8_i32_243 = arith.constant 8 : i32
    %394 = arith.addi %393, %c8_i32_243 : i32
    %395 = arith.index_cast %394 : i32 to index
    %396 = memref.load %arg1[%395] : memref<64xi32, #tpu.memory_space<smem>>
    %397 = arith.index_cast %396 : i32 to index
    %c0_244 = arith.constant 0 : index
    %398 = vector.load %arg2[%397, %c0_244] : memref<50x128xf32, #tpu.memory_space<vmem>>, vector<1x128xf32>
    %c8_245 = arith.constant 8 : index
    %c384_246 = arith.constant 384 : index
    %399 = vector.load %arg8[%c8_245, %c384_246] : memref<16x512xf32, #tpu.memory_space<vmem>>, vector<1x128xf32>
    tpu.vector_store %arg8[%c8_245, %c384_246], %398 {strides = array<i32>} : memref<16x512xf32, #tpu.memory_space<vmem>>, vector<1x128xf32>,
    %c48_i32_247 = arith.constant 48 : i32
    %400 = arith.addi %0, %c48_i32_247 : i32
    %c9_i32_248 = arith.constant 9 : i32
    %401 = arith.addi %400, %c9_i32_248 : i32
    %402 = arith.index_cast %401 : i32 to index
    %403 = memref.load %arg1[%402] : memref<64xi32, #tpu.memory_space<smem>>
    %404 = arith.index_cast %403 : i32 to index
    %c0_249 = arith.constant 0 : index
    %405 = vector.load %arg2[%404, %c0_249] : memref<50x128xf32, #tpu.memory_space<vmem>>, vector<1x128xf32>
    %c9_250 = arith.constant 9 : index
    %c384_251 = arith.constant 384 : index
    %406 = vector.load %arg8[%c9_250, %c384_251] : memref<16x512xf32, #tpu.memory_space<vmem>>, vector<1x128xf32>
    tpu.vector_store %arg8[%c9_250, %c384_251], %405 {strides = array<i32>} : memref<16x512xf32, #tpu.memory_space<vmem>>, vector<1x128xf32>,
    %c48_i32_252 = arith.constant 48 : i32
    %407 = arith.addi %0, %c48_i32_252 : i32
    %c10_i32_253 = arith.constant 10 : i32
    %408 = arith.addi %407, %c10_i32_253 : i32
    %409 = arith.index_cast %408 : i32 to index
    %410 = memref.load %arg1[%409] : memref<64xi32, #tpu.memory_space<smem>>
    %411 = arith.index_cast %410 : i32 to index
    %c0_254 = arith.constant 0 : index
    %412 = vector.load %arg2[%411, %c0_254] : memref<50x128xf32, #tpu.memory_space<vmem>>, vector<1x128xf32>
    %c10_255 = arith.constant 10 : index
    %c384_256 = arith.constant 384 : index
    %413 = vector.load %arg8[%c10_255, %c384_256] : memref<16x512xf32, #tpu.memory_space<vmem>>, vector<1x128xf32>
    tpu.vector_store %arg8[%c10_255, %c384_256], %412 {strides = array<i32>} : memref<16x512xf32, #tpu.memory_space<vmem>>, vector<1x128xf32>,
    %c48_i32_257 = arith.constant 48 : i32
    %414 = arith.addi %0, %c48_i32_257 : i32
    %c11_i32_258 = arith.constant 11 : i32
    %415 = arith.addi %414, %c11_i32_258 : i32
    %416 = arith.index_cast %415 : i32 to index
    %417 = memref.load %arg1[%416] : memref<64xi32, #tpu.memory_space<smem>>
    %418 = arith.index_cast %417 : i32 to index
    %c0_259 = arith.constant 0 : index
    %419 = vector.load %arg2[%418, %c0_259] : memref<50x128xf32, #tpu.memory_space<vmem>>, vector<1x128xf32>
    %c11_260 = arith.constant 11 : index
    %c384_261 = arith.constant 384 : index
    %420 = vector.load %arg8[%c11_260, %c384_261] : memref<16x512xf32, #tpu.memory_space<vmem>>, vector<1x128xf32>
    tpu.vector_store %arg8[%c11_260, %c384_261], %419 {strides = array<i32>} : memref<16x512xf32, #tpu.memory_space<vmem>>, vector<1x128xf32>,
    %c48_i32_262 = arith.constant 48 : i32
    %421 = arith.addi %0, %c48_i32_262 : i32
    %c12_i32_263 = arith.constant 12 : i32
    %422 = arith.addi %421, %c12_i32_263 : i32
    %423 = arith.index_cast %422 : i32 to index
    %424 = memref.load %arg1[%423] : memref<64xi32, #tpu.memory_space<smem>>
    %425 = arith.index_cast %424 : i32 to index
    %c0_264 = arith.constant 0 : index
    %426 = vector.load %arg2[%425, %c0_264] : memref<50x128xf32, #tpu.memory_space<vmem>>, vector<1x128xf32>
    %c12_265 = arith.constant 12 : index
    %c384_266 = arith.constant 384 : index
    %427 = vector.load %arg8[%c12_265, %c384_266] : memref<16x512xf32, #tpu.memory_space<vmem>>, vector<1x128xf32>
    tpu.vector_store %arg8[%c12_265, %c384_266], %426 {strides = array<i32>} : memref<16x512xf32, #tpu.memory_space<vmem>>, vector<1x128xf32>,
    %c48_i32_267 = arith.constant 48 : i32
    %428 = arith.addi %0, %c48_i32_267 : i32
    %c13_i32_268 = arith.constant 13 : i32
    %429 = arith.addi %428, %c13_i32_268 : i32
    %430 = arith.index_cast %429 : i32 to index
    %431 = memref.load %arg1[%430] : memref<64xi32, #tpu.memory_space<smem>>
    %432 = arith.index_cast %431 : i32 to index
    %c0_269 = arith.constant 0 : index
    %433 = vector.load %arg2[%432, %c0_269] : memref<50x128xf32, #tpu.memory_space<vmem>>, vector<1x128xf32>
    %c13_270 = arith.constant 13 : index
    %c384_271 = arith.constant 384 : index
    %434 = vector.load %arg8[%c13_270, %c384_271] : memref<16x512xf32, #tpu.memory_space<vmem>>, vector<1x128xf32>
    tpu.vector_store %arg8[%c13_270, %c384_271], %433 {strides = array<i32>} : memref<16x512xf32, #tpu.memory_space<vmem>>, vector<1x128xf32>,
    %c48_i32_272 = arith.constant 48 : i32
    %435 = arith.addi %0, %c48_i32_272 : i32
    %c14_i32_273 = arith.constant 14 : i32
    %436 = arith.addi %435, %c14_i32_273 : i32
    %437 = arith.index_cast %436 : i32 to index
    %438 = memref.load %arg1[%437] : memref<64xi32, #tpu.memory_space<smem>>
    %439 = arith.index_cast %438 : i32 to index
    %c0_274 = arith.constant 0 : index
    %440 = vector.load %arg2[%439, %c0_274] : memref<50x128xf32, #tpu.memory_space<vmem>>, vector<1x128xf32>
    %c14_275 = arith.constant 14 : index
    %c384_276 = arith.constant 384 : index
    %441 = vector.load %arg8[%c14_275, %c384_276] : memref<16x512xf32, #tpu.memory_space<vmem>>, vector<1x128xf32>
    tpu.vector_store %arg8[%c14_275, %c384_276], %440 {strides = array<i32>} : memref<16x512xf32, #tpu.memory_space<vmem>>, vector<1x128xf32>,
    %c48_i32_277 = arith.constant 48 : i32
    %442 = arith.addi %0, %c48_i32_277 : i32
    %c15_i32_278 = arith.constant 15 : i32
    %443 = arith.addi %442, %c15_i32_278 : i32
    %444 = arith.index_cast %443 : i32 to index
    %445 = memref.load %arg1[%444] : memref<64xi32, #tpu.memory_space<smem>>
    %446 = arith.index_cast %445 : i32 to index
    %c0_279 = arith.constant 0 : index
    %447 = vector.load %arg2[%446, %c0_279] : memref<50x128xf32, #tpu.memory_space<vmem>>, vector<1x128xf32>
    %c15_280 = arith.constant 15 : index
    %c384_281 = arith.constant 384 : index
    %448 = vector.load %arg8[%c15_280, %c384_281] : memref<16x512xf32, #tpu.memory_space<vmem>>, vector<1x128xf32>
    tpu.vector_store %arg8[%c15_280, %c384_281], %447 {strides = array<i32>} : memref<16x512xf32, #tpu.memory_space<vmem>>, vector<1x128xf32>,
    %c0_282 = arith.constant 0 : index
    %c0_283 = arith.constant 0 : index
    %449 = vector.load %arg8[%c0_282, %c0_283] : memref<16x512xf32, #tpu.memory_space<vmem>>, vector<16x512xf32>
    %450 = tpu.iota {dimensions = array<i32: 1>} : vector<16x512xi32>
    %c128_i32 = arith.constant 128 : i32
    %c0_i32_284 = arith.constant 0 : i32
    %451 = arith.cmpi eq, %c128_i32, %c0_i32_284 : i32
    %c1_i32_285 = arith.constant 1 : i32
    %452 = arith.select %451, %c1_i32_285, %c128_i32 : i32
    %453 = vector.broadcast %452 : i32 to vector<16x512xi32>
    %454 = arith.remsi %450, %453 : vector<16x512xi32>
    %c0_i32_286 = arith.constant 0 : i32
    %455 = vector.broadcast %c0_i32_286 : i32 to vector<16x512xi32>
    %456 = arith.cmpi ne, %454, %455 : vector<16x512xi32>
    %c0_i32_287 = arith.constant 0 : i32
    %457 = vector.broadcast %c0_i32_287 : i32 to vector<16x512xi32>
    %458 = arith.cmpi slt, %454, %457 : vector<16x512xi32>
    %c0_i32_288 = arith.constant 0 : i32
    %459 = arith.cmpi slt, %452, %c0_i32_288 : i32
    %460 = vector.broadcast %459 : i1 to vector<16x512xi1>
    %461 = vector.broadcast %460 : vector<16x512xi1> to vector<16x512xi1>
    %462 = arith.xori %458, %461 : vector<16x512xi1>
    %463 = arith.andi %462, %456 : vector<16x512xi1>
    %464 = vector.broadcast %452 : i32 to vector<16x512xi32>
    %465 = arith.addi %454, %464 : vector<16x512xi32>
    %466 = arith.select %463, %465, %454 : vector<16x512xi1>, vector<16x512xi32>
    %c1_i32_289 = arith.constant 1 : i32
    %467 = vector.broadcast %c1_i32_289 : i32 to vector<16x512xi32>
    %468 = arith.cmpi sge, %466, %467 : vector<16x512xi32>
    %c1_i32_290 = arith.constant 1 : i32
    %469 = tpu.dynamic_rotate %449 by %c1_i32_290 dim 1 : vector<16x512xf32>, i32 -> vector<16x512xf32>
    %cst = arith.constant 0.000000e+00 : f32
    %470 = vector.broadcast %cst : f32 to vector<16x512xf32>
    %471 = arith.select %468, %469, %470 : vector<16x512xi1>, vector<16x512xf32>
    %c126_i32 = arith.constant 126 : i32
    %472 = vector.broadcast %c126_i32 : i32 to vector<16x512xi32>
    %473 = arith.cmpi sle, %466, %472 : vector<16x512xi32>
    %c511_i32 = arith.constant 511 : i32
    %474 = tpu.dynamic_rotate %449 by %c511_i32 dim 1 : vector<16x512xf32>, i32 -> vector<16x512xf32>
    %cst_291 = arith.constant 0.000000e+00 : f32
    %475 = vector.broadcast %cst_291 : f32 to vector<16x512xf32>
    %476 = arith.select %473, %474, %475 : vector<16x512xi1>, vector<16x512xf32>
    %477 = tpu.concatenate %471, %449, %476 in 0 : vector<16x512xf32>, vector<16x512xf32>, vector<16x512xf32> -> vector<48x512xf32>
    %c0_292 = arith.constant 0 : index
    %c0_293 = arith.constant 0 : index
    %478 = vector.load %arg3[%c0_292, %c0_293] : memref<16x48xf32, #tpu.memory_space<vmem>>, vector<16x48xf32>
    %cst_294 = arith.constant dense<0.000000e+00> : vector<16x512xf32>
    %479 = tpu.matmul %478, %477, %cst_294 {dimension_numbers = #tpu.dot_dimension_numbers<[1], [0], [0], [1], [0, 0, 1, 1], [], []>} : vector<16x48xf32>, vector<48x512xf32>, vector<16x512xf32> -> vector<16x512xf32>
    %c0_295 = arith.constant 0 : index
    %c0_296 = arith.constant 0 : index
    %480 = vector.load %arg4[%c0_295, %c0_296] : memref<16x1xf32, #tpu.memory_space<vmem>>, vector<16x1xf32>
    %481 = vector.broadcast %480 : vector<16x1xf32> to vector<16x512xf32>
    %482 = arith.addf %479, %481 : vector<16x512xf32>
    %cst_297 = arith.constant 0.000000e+00 : f32
    %483 = vector.broadcast %cst_297 : f32 to vector<16x512xf32>
    %484 = arith.maximumf %482, %483 : vector<16x512xf32>
    %c0_298 = arith.constant 0 : index
    %c0_299 = arith.constant 0 : index
    %485 = vector.load %arg5[%c0_298, %c0_299] : memref<16x4xf32, #tpu.memory_space<vmem>>, vector<16x4xf32>
    %486 = vector.extract_strided_slice %484 {offsets = [0, 0], sizes = [16, 128], strides = [1, 1]} : vector<16x512xf32> to vector<16x128xf32>
    %cst_300 = arith.constant dense<0xFF800000> : vector<16xf32>
    %487 = vector.multi_reduction <maximumf>, %486, %cst_300 [1] : vector<16x128xf32> to vector<16xf32>
    %488 = vector.shape_cast %487 : vector<16xf32> to vector<16x1xf32>
    %489 = vector.broadcast %488 : vector<16x1xf32> to vector<16x4xf32>
    %490 = arith.mulf %489, %485 : vector<16x4xf32>
    %cst_301 = arith.constant dense<0.000000e+00> : vector<4xf32>
    %491 = vector.multi_reduction <add>, %490, %cst_301 [0] : vector<16x4xf32> to vector<4xf32>
    %492 = vector.shape_cast %491 : vector<4xf32> to vector<1x4xf32>
    %493 = vector.extract_strided_slice %484 {offsets = [0, 128], sizes = [16, 128], strides = [1, 1]} : vector<16x512xf32> to vector<16x128xf32>
    %cst_302 = arith.constant dense<0xFF800000> : vector<16xf32>
    %494 = vector.multi_reduction <maximumf>, %493, %cst_302 [1] : vector<16x128xf32> to vector<16xf32>
    %495 = vector.shape_cast %494 : vector<16xf32> to vector<16x1xf32>
    %496 = vector.broadcast %495 : vector<16x1xf32> to vector<16x4xf32>
    %497 = arith.mulf %496, %485 : vector<16x4xf32>
    %cst_303 = arith.constant dense<0.000000e+00> : vector<4xf32>
    %498 = vector.multi_reduction <add>, %497, %cst_303 [0] : vector<16x4xf32> to vector<4xf32>
    %499 = vector.shape_cast %498 : vector<4xf32> to vector<1x4xf32>
    %500 = vector.extract_strided_slice %484 {offsets = [0, 256], sizes = [16, 128], strides = [1, 1]} : vector<16x512xf32> to vector<16x128xf32>
    %cst_304 = arith.constant dense<0xFF800000> : vector<16xf32>
    %501 = vector.multi_reduction <maximumf>, %500, %cst_304 [1] : vector<16x128xf32> to vector<16xf32>
    %502 = vector.shape_cast %501 : vector<16xf32> to vector<16x1xf32>
    %503 = vector.broadcast %502 : vector<16x1xf32> to vector<16x4xf32>
    %504 = arith.mulf %503, %485 : vector<16x4xf32>
    %cst_305 = arith.constant dense<0.000000e+00> : vector<4xf32>
    %505 = vector.multi_reduction <add>, %504, %cst_305 [0] : vector<16x4xf32> to vector<4xf32>
    %506 = vector.shape_cast %505 : vector<4xf32> to vector<1x4xf32>
    %507 = vector.extract_strided_slice %484 {offsets = [0, 384], sizes = [16, 128], strides = [1, 1]} : vector<16x512xf32> to vector<16x128xf32>
    %cst_306 = arith.constant dense<0xFF800000> : vector<16xf32>
    %508 = vector.multi_reduction <maximumf>, %507, %cst_306 [1] : vector<16x128xf32> to vector<16xf32>
    %509 = vector.shape_cast %508 : vector<16xf32> to vector<16x1xf32>
    %510 = vector.broadcast %509 : vector<16x1xf32> to vector<16x4xf32>
    %511 = arith.mulf %510, %485 : vector<16x4xf32>
    %cst_307 = arith.constant dense<0.000000e+00> : vector<4xf32>
    %512 = vector.multi_reduction <add>, %511, %cst_307 [0] : vector<16x4xf32> to vector<4xf32>
    %513 = vector.shape_cast %512 : vector<4xf32> to vector<1x4xf32>
    %514 = tpu.concatenate %492, %499, %506, %513 in 0 : vector<1x4xf32>, vector<1x4xf32>, vector<1x4xf32>, vector<1x4xf32> -> vector<4x4xf32>
    %c0_308 = arith.constant 0 : index
    %c0_309 = arith.constant 0 : index
    %515 = vector.load %arg6[%c0_308, %c0_309] : memref<1x4xf32, #tpu.memory_space<vmem>>, vector<1x4xf32>
    %516 = vector.broadcast %515 : vector<1x4xf32> to vector<4x4xf32>
    %517 = arith.addf %514, %516 : vector<4x4xf32>
    %c0_310 = arith.constant 0 : index
    %c0_311 = arith.constant 0 : index
    %518 = vector.load %arg7[%c0_310, %c0_311] : memref<4x4xf32, #tpu.memory_space<vmem>>, vector<4x4xf32>
    tpu.vector_store %arg7[%c0_310, %c0_311], %517 {strides = array<i32>} : memref<4x4xf32, #tpu.memory_space<vmem>>, vector<4x4xf32>,
    return
  }
  func.func @transform_0(%arg0: i32, %arg1: memref<64xi32, #tpu.memory_space<smem>>) -> (i32, i32) {
    %c0_i32 = arith.constant 0 : i32
    %c0_i32_0 = arith.constant 0 : i32
    %c0_i32_1 = arith.constant 0 : i32
    return %c0_i32, %c0_i32_0 : i32, i32
  }
  func.func @transform_1(%arg0: i32, %arg1: memref<64xi32, #tpu.memory_space<smem>>) -> (i32, i32) {
    %c0_i32 = arith.constant 0 : i32
    %c0_i32_0 = arith.constant 0 : i32
    %c0_i32_1 = arith.constant 0 : i32
    return %c0_i32, %c0_i32_0 : i32, i32
  }
  func.func @transform_2(%arg0: i32, %arg1: memref<64xi32, #tpu.memory_space<smem>>) -> (i32, i32) {
    %c0_i32 = arith.constant 0 : i32
    %c0_i32_0 = arith.constant 0 : i32
    %c0_i32_1 = arith.constant 0 : i32
    return %c0_i32, %c0_i32_0 : i32, i32
  }
  func.func @transform_3(%arg0: i32, %arg1: memref<64xi32, #tpu.memory_space<smem>>) -> (i32, i32) {
    %c0_i32 = arith.constant 0 : i32
    %c0_i32_0 = arith.constant 0 : i32
    %c0_i32_1 = arith.constant 0 : i32
    return %c0_i32, %c0_i32_0 : i32, i32
  }
  func.func @transform_4(%arg0: i32, %arg1: memref<64xi32, #tpu.memory_space<smem>>) -> (i32, i32) {
    %c0_i32 = arith.constant 0 : i32
    %c0_i32_0 = arith.constant 0 : i32
    %c0_i32_1 = arith.constant 0 : i32
    return %c0_i32, %c0_i32_0 : i32, i32
  }
  func.func @transform_5(%arg0: i32, %arg1: memref<64xi32, #tpu.memory_space<smem>>) -> (i32, i32) {
    %c0_i32 = arith.constant 0 : i32
    %c0_i32_0 = arith.constant 0 : i32
    return %arg0, %c0_i32 : i32, i32
  }
}

</mosaic_0001>

<llo_original>
// kernel: tpu_custom_call.1
$region0: #{tpu_custom_call.1}
  #allocation0 [shape = 'u32[]', space=smem, size = 0x4, offset = 0x4, fixed_abs, tag = 'smem constant byte address 0x4 - core index']
  #allocation1 [shape = 'u32[144,128]{1,0:T(1,128)}', space=vmem, size = 0x12000, scoped, tag = 'internal scratch']
  #allocation2 [shape = 'f32[16,512]{1,0:T(8,128)}', space=vmem, size = 0x8000, scoped, tag = 'scratch operand']
  #allocation3 [shape = 's32[1]{0}', space=sflag, size = 0x4, scoped, tag = 'scoped memory for tpu_custom_call.1']
  #allocation4 [shape = 'u8[512]{0}', space=smem, size = 0x200, scoped, tag = 'prefetched SMEM operand 0']
  %s0 = inlined_call_operand.vmem [shape: s32[64], index: 0, kind: input, shape index: {}]
  %s1 = inlined_call_operand.hbm [shape: f32[50,128], index: 1, kind: input, shape index: {}]
  %s2 = inlined_call_operand.vmem [shape: f32[16,48], index: 2, kind: input, shape index: {}]
  %s3 = inlined_call_operand.vmem [shape: f32[16,1], index: 3, kind: input, shape index: {}]
  %s4 = inlined_call_operand.vmem [shape: f32[16,4], index: 4, kind: input, shape index: {}]
  %s5 = inlined_call_operand.vmem [shape: f32[1,4], index: 5, kind: input, shape index: {}]
  %s6 = inlined_call_operand.hbm [shape: f32[4,4], index: 6, kind: output, shape index: {}]
  %s7 = sld [smem:[#allocation0]]
  $region34: #{tpu_custom_call.1} parent=0
    _
  %s9 = ssub.s32 1, %s7
  %s10 = scalar_select 0, %s9, %s7
  %s11 = sshll.u32 %s0, 4
  %s12 = int_to_ptr.vmem [resolvable:$true] %s11
  %14 = dma.vmem_to_smem %s12, 16, [#allocation4], [#allocation3]
  %15 = dma.done [#allocation3], 16
  %16 = sfence
  $region1: #{tpu_custom_call.1} parent=0
    #allocation5 [shape = 'u8[28672]{0}', space=vmem, size = 0x7000, scoped, tag = 'input window, operand 1, single buffered']
    #allocation6 [shape = 's32[1]{0}', space=sflag, size = 0x4, scoped, tag = 'scoped memory for tpu_custom_call.1']
    #allocation7 [shape = 's32[1]{0}', space=sflag, size = 0x4, scoped, tag = 'scoped memory for tpu_custom_call.1']
    #allocation8 [shape = 'u8[2048]{0}', space=vmem, size = 0x800, scoped, tag = 'output window, operand 0, single buffered']
    %17 = vsyncpa [#allocation6], 0
    %18 = vsyncpa [#allocation7], 0
    // Predicated region
    $region2: #{tpu_custom_call.1} parent=1 // pred_check
      _
    $region3: #{tpu_custom_call.1} parent=1 // pred_check_branch
      %20 = sbr.rel (0) target = $region5
    $region4: #{tpu_custom_call.1} parent=1 // pred_region
      %s22 = ssub.s32 896, 896
      %23 = vsyncadd [#allocation6], %s22
      %s24 = sshll.u32 [#allocation5], 4
      %s25 = int_to_ptr.vmem [resolvable:$true] %s24
      %30 = dma.hbm_to_vmem [thread:$0]  %s1, 896, %s25, [#allocation6], 128, 128, 8
    $region5: #{tpu_custom_call.1} parent=1 // pred_fallthru
      _
    // Predicated region
    $region6: #{tpu_custom_call.1} parent=1 // pred_check
      _
    $region7: #{tpu_custom_call.1} parent=1 // pred_check_branch
      %32 = sbr.rel (0) target = $region9
    $region8: #{tpu_custom_call.1} parent=1 // pred_region
      _
    $region9: #{tpu_custom_call.1} parent=1 // pred_fallthru
      _
    // Predicated region
    $region10: #{tpu_custom_call.1} parent=1 // pred_check
      _
    $region11: #{tpu_custom_call.1} parent=1 // pred_check_branch
      %34 = sbr.rel (0) target = $region13
    $region12: #{tpu_custom_call.1} parent=1 // pred_region
      _
    $region13: #{tpu_custom_call.1} parent=1 // pred_fallthru
      _
    // Predicated region
    $region14: #{tpu_custom_call.1} parent=1 // pred_check
      _
    $region15: #{tpu_custom_call.1} parent=1 // pred_check_branch
      %36 = sbr.rel (0) target = $region17
    $region16: #{tpu_custom_call.1} parent=1 // pred_region
      _
    $region17: #{tpu_custom_call.1} parent=1 // pred_fallthru
      _
    // Predicated region
    $region18: #{tpu_custom_call.1} parent=1 // pred_check
      _
    $region19: #{tpu_custom_call.1} parent=1 // pred_check_branch
      %38 = sbr.rel (0) target = $region21
    $region20: #{tpu_custom_call.1} parent=1 // pred_region
      _
    $region21: #{tpu_custom_call.1} parent=1 // pred_fallthru
      _
    // Predicated region
    $region22: #{tpu_custom_call.1} parent=1 // pred_check
      _
    $region23: #{tpu_custom_call.1} parent=1 // pred_check_branch
      %40 = sbr.rel (0) target = $region25
    $region24: #{tpu_custom_call.1} parent=1 // pred_region
      %41 = dma.done [#allocation6], 896
    $region25: #{tpu_custom_call.1} parent=1 // pred_fallthru
      _
    %s42 = smul.u32 0, 64
    %s43 = sld [smem:[#allocation4 + %s42]]
    %s44 = scalar_lea.vmem [#allocation5], %s43
    %v45 = vld [vmem:[%s44] sm:$0x1]
    %46 = vst [vmem:[#allocation2] sm:$0x1] %v45
    %s47 = sadd.s32 %s42, 1
    %s48 = sld [smem:[#allocation4 + %s47]]
    %s49 = scalar_lea.vmem [#allocation5], %s48
    %v50 = vld [vmem:[%s49] sm:$0x1]
    %51 = vst [vmem:[#allocation2 + $0x1] sm:$0x1] %v50
    %s52 = sadd.s32 %s42, 2
    %s53 = sld [smem:[#allocation4 + %s52]]
    %s54 = scalar_lea.vmem [#allocation5], %s53
    %v55 = vld [vmem:[%s54] sm:$0x1]
    %56 = vst [vmem:[#allocation2 + $0x2] sm:$0x1] %v55
    %s57 = sadd.s32 %s42, 3
    %s58 = sld [smem:[#allocation4 + %s57]]
    %s59 = scalar_lea.vmem [#allocation5], %s58
    %v60 = vld [vmem:[%s59] sm:$0x1]
    %61 = vst [vmem:[#allocation2 + $0x3] sm:$0x1] %v60
    %s62 = sadd.s32 %s42, 4
    %s63 = sld [smem:[#allocation4 + %s62]]
    %s64 = scalar_lea.vmem [#allocation5], %s63
    %v65 = vld [vmem:[%s64] sm:$0x1]
    %66 = vst [vmem:[#allocation2 + $0x4] sm:$0x1] %v65
    %s67 = sadd.s32 %s42, 5
    %s68 = sld [smem:[#allocation4 + %s67]]
    %s69 = scalar_lea.vmem [#allocation5], %s68
    %v70 = vld [vmem:[%s69] sm:$0x1]
    %71 = vst [vmem:[#allocation2 + $0x5] sm:$0x1] %v70
    %s72 = sadd.s32 %s42, 6
    %s73 = sld [smem:[#allocation4 + %s72]]
    %s74 = scalar_lea.vmem [#allocation5], %s73
    %v75 = vld [vmem:[%s74] sm:$0x1]
    %76 = vst [vmem:[#allocation2 + $0x6] sm:$0x1] %v75
    %s77 = sadd.s32 %s42, 7
    %s78 = sld [smem:[#allocation4 + %s77]]
    %s79 = scalar_lea.vmem [#allocation5], %s78
    %v80 = vld [vmem:[%s79] sm:$0x1]
    %81 = vst [vmem:[#allocation2 + $0x7] sm:$0x1] %v80
    %s82 = sadd.s32 %s42, 8
    %s83 = sld [smem:[#allocation4 + %s82]]
    %s84 = scalar_lea.vmem [#allocation5], %s83
    %v85 = vld [vmem:[%s84] sm:$0x1]
    %86 = vst [vmem:[#allocation2 + $0x20] sm:$0x1] %v85
    %s87 = sadd.s32 %s42, 9
    %s88 = sld [smem:[#allocation4 + %s87]]
    %s89 = scalar_lea.vmem [#allocation5], %s88
    %v90 = vld [vmem:[%s89] sm:$0x1]
    %91 = vst [vmem:[#allocation2 + $0x21] sm:$0x1] %v90
    %s92 = sadd.s32 %s42, 10
    %s93 = sld [smem:[#allocation4 + %s92]]
    %s94 = scalar_lea.vmem [#allocation5], %s93
    %v95 = vld [vmem:[%s94] sm:$0x1]
    %96 = vst [vmem:[#allocation2 + $0x22] sm:$0x1] %v95
    %s97 = sadd.s32 %s42, 11
    %s98 = sld [smem:[#allocation4 + %s97]]
    %s99 = scalar_lea.vmem [#allocation5], %s98
    %v100 = vld [vmem:[%s99] sm:$0x1]
    %101 = vst [vmem:[#allocation2 + $0x23] sm:$0x1] %v100
    %s102 = sadd.s32 %s42, 12
    %s103 = sld [smem:[#allocation4 + %s102]]
    %s104 = scalar_lea.vmem [#allocation5], %s103
    %v105 = vld [vmem:[%s104] sm:$0x1]
    %106 = vst [vmem:[#allocation2 + $0x24] sm:$0x1] %v105
    %s107 = sadd.s32 %s42, 13
    %s108 = sld [smem:[#allocation4 + %s107]]
    %s109 = scalar_lea.vmem [#allocation5], %s108
    %v110 = vld [vmem:[%s109] sm:$0x1]
    %111 = vst [vmem:[#allocation2 + $0x25] sm:$0x1] %v110
    %s112 = sadd.s32 %s42, 14
    %s113 = sld [smem:[#allocation4 + %s112]]
    %s114 = scalar_lea.vmem [#allocation5], %s113
    %v115 = vld [vmem:[%s114] sm:$0x1]
    %116 = vst [vmem:[#allocation2 + $0x26] sm:$0x1] %v115
    %s117 = sadd.s32 %s42, 15
    %s118 = sld [smem:[#allocation4 + %s117]]
    %s119 = scalar_lea.vmem [#allocation5], %s118
    %v120 = vld [vmem:[%s119] sm:$0x1]
    %121 = vst [vmem:[#allocation2 + $0x27] sm:$0x1] %v120
    %s122 = sadd.s32 %s42, 16
    %s123 = sld [smem:[#allocation4 + %s122]]
    %s124 = scalar_lea.vmem [#allocation5], %s123
    %v125 = vld [vmem:[%s124] sm:$0x1]
    %126 = vst [vmem:[#allocation2 + $0x8] sm:$0x1] %v125
    %s127 = sadd.s32 %s42, 17
    %s128 = sld [smem:[#allocation4 + %s127]]
    %s129 = scalar_lea.vmem [#allocation5], %s128
    %v130 = vld [vmem:[%s129] sm:$0x1]
    %131 = vst [vmem:[#allocation2 + $0x9] sm:$0x1] %v130
    %s132 = sadd.s32 %s42, 18
    %s133 = sld [smem:[#allocation4 + %s132]]
    %s134 = scalar_lea.vmem [#allocation5], %s133
    %v135 = vld [vmem:[%s134] sm:$0x1]
    %136 = vst [vmem:[#allocation2 + $0xa] sm:$0x1] %v135
    %s137 = sadd.s32 %s42, 19
    %s138 = sld [smem:[#allocation4 + %s137]]
    %s139 = scalar_lea.vmem [#allocation5], %s138
    %v140 = vld [vmem:[%s139] sm:$0x1]
    %141 = vst [vmem:[#allocation2 + $0xb] sm:$0x1] %v140
    %s142 = sadd.s32 %s42, 20
    %s143 = sld [smem:[#allocation4 + %s142]]
    %s144 = scalar_lea.vmem [#allocation5], %s143
    %v145 = vld [vmem:[%s144] sm:$0x1]
    %146 = vst [vmem:[#allocation2 + $0xc] sm:$0x1] %v145
    %s147 = sadd.s32 %s42, 21
    %s148 = sld [smem:[#allocation4 + %s147]]
    %s149 = scalar_lea.vmem [#allocation5], %s148
    %v150 = vld [vmem:[%s149] sm:$0x1]
    %151 = vst [vmem:[#allocation2 + $0xd] sm:$0x1] %v150
    %s152 = sadd.s32 %s42, 22
    %s153 = sld [smem:[#allocation4 + %s152]]
    %s154 = scalar_lea.vmem [#allocation5], %s153
    %v155 = vld [vmem:[%s154] sm:$0x1]
    %156 = vst [vmem:[#allocation2 + $0xe] sm:$0x1] %v155
    %s157 = sadd.s32 %s42, 23
    %s158 = sld [smem:[#allocation4 + %s157]]
    %s159 = scalar_lea.vmem [#allocation5], %s158
    %v160 = vld [vmem:[%s159] sm:$0x1]
    %161 = vst [vmem:[#allocation2 + $0xf] sm:$0x1] %v160
    %s162 = sadd.s32 %s42, 24
    %s163 = sld [smem:[#allocation4 + %s162]]
    %s164 = scalar_lea.vmem [#allocation5], %s163
    %v165 = vld [vmem:[%s164] sm:$0x1]
    %166 = vst [vmem:[#allocation2 + $0x28] sm:$0x1] %v165
    %s167 = sadd.s32 %s42, 25
    %s168 = sld [smem:[#allocation4 + %s167]]
    %s169 = scalar_lea.vmem [#allocation5], %s168
    %v170 = vld [vmem:[%s169] sm:$0x1]
    %171 = vst [vmem:[#allocation2 + $0x29] sm:$0x1] %v170
    %s172 = sadd.s32 %s42, 26
    %s173 = sld [smem:[#allocation4 + %s172]]
    %s174 = scalar_lea.vmem [#allocation5], %s173
    %v175 = vld [vmem:[%s174] sm:$0x1]
    %176 = vst [vmem:[#allocation2 + $0x2a] sm:$0x1] %v175
    %s177 = sadd.s32 %s42, 27
    %s178 = sld [smem:[#allocation4 + %s177]]
    %s179 = scalar_lea.vmem [#allocation5], %s178
    %v180 = vld [vmem:[%s179] sm:$0x1]
    %181 = vst [vmem:[#allocation2 + $0x2b] sm:$0x1] %v180
    %s182 = sadd.s32 %s42, 28
    %s183 = sld [smem:[#allocation4 + %s182]]
    %s184 = scalar_lea.vmem [#allocation5], %s183
    %v185 = vld [vmem:[%s184] sm:$0x1]
    %186 = vst [vmem:[#allocation2 + $0x2c] sm:$0x1] %v185
    %s187 = sadd.s32 %s42, 29
    %s188 = sld [smem:[#allocation4 + %s187]]
    %s189 = scalar_lea.vmem [#allocation5], %s188
    %v190 = vld [vmem:[%s189] sm:$0x1]
    %191 = vst [vmem:[#allocation2 + $0x2d] sm:$0x1] %v190
    %s192 = sadd.s32 %s42, 30
    %s193 = sld [smem:[#allocation4 + %s192]]
    %s194 = scalar_lea.vmem [#allocation5], %s193
    %v195 = vld [vmem:[%s194] sm:$0x1]
    %196 = vst [vmem:[#allocation2 + $0x2e] sm:$0x1] %v195
    %s197 = sadd.s32 %s42, 31
    %s198 = sld [smem:[#allocation4 + %s197]]
    %s199 = scalar_lea.vmem [#allocation5], %s198
    %v200 = vld [vmem:[%s199] sm:$0x1]
    %201 = vst [vmem:[#allocation2 + $0x2f] sm:$0x1] %v200
    %s202 = sadd.s32 %s42, 32
    %s203 = sld [smem:[#allocation4 + %s202]]
    %s204 = scalar_lea.vmem [#allocation5], %s203
    %v205 = vld [vmem:[%s204] sm:$0x1]
    %206 = vst [vmem:[#allocation2 + $0x10] sm:$0x1] %v205
    %s207 = sadd.s32 %s42, 33
    %s208 = sld [smem:[#allocation4 + %s207]]
    %s209 = scalar_lea.vmem [#allocation5], %s208
    %v210 = vld [vmem:[%s209] sm:$0x1]
    %211 = vst [vmem:[#allocation2 + $0x11] sm:$0x1] %v210
    %s212 = sadd.s32 %s42, 34
    %s213 = sld [smem:[#allocation4 + %s212]]
    %s214 = scalar_lea.vmem [#allocation5], %s213
    %v215 = vld [vmem:[%s214] sm:$0x1]
    %216 = vst [vmem:[#allocation2 + $0x12] sm:$0x1] %v215
    %s217 = sadd.s32 %s42, 35
    %s218 = sld [smem:[#allocation4 + %s217]]
    %s219 = scalar_lea.vmem [#allocation5], %s218
    %v220 = vld [vmem:[%s219] sm:$0x1]
    %221 = vst [vmem:[#allocation2 + $0x13] sm:$0x1] %v220
    %s222 = sadd.s32 %s42, 36
    %s223 = sld [smem:[#allocation4 + %s222]]
    %s224 = scalar_lea.vmem [#allocation5], %s223
    %v225 = vld [vmem:[%s224] sm:$0x1]
    %226 = vst [vmem:[#allocation2 + $0x14] sm:$0x1] %v225
    %s227 = sadd.s32 %s42, 37
    %s228 = sld [smem:[#allocation4 + %s227]]
    %s229 = scalar_lea.vmem [#allocation5], %s228
    %v230 = vld [vmem:[%s229] sm:$0x1]
    %231 = vst [vmem:[#allocation2 + $0x15] sm:$0x1] %v230
    %s232 = sadd.s32 %s42, 38
    %s233 = sld [smem:[#allocation4 + %s232]]
    %s234 = scalar_lea.vmem [#allocation5], %s233
    %v235 = vld [vmem:[%s234] sm:$0x1]
    %236 = vst [vmem:[#allocation2 + $0x16] sm:$0x1] %v235
    %s237 = sadd.s32 %s42, 39
    %s238 = sld [smem:[#allocation4 + %s237]]
    %s239 = scalar_lea.vmem [#allocation5], %s238
    %v240 = vld [vmem:[%s239] sm:$0x1]
    %241 = vst [vmem:[#allocation2 + $0x17] sm:$0x1] %v240
    %s242 = sadd.s32 %s42, 40
    %s243 = sld [smem:[#allocation4 + %s242]]
    %s244 = scalar_lea.vmem [#allocation5], %s243
    %v245 = vld [vmem:[%s244] sm:$0x1]
    %246 = vst [vmem:[#allocation2 + $0x30] sm:$0x1] %v245
    %s247 = sadd.s32 %s42, 41
    %s248 = sld [smem:[#allocation4 + %s247]]
    %s249 = scalar_lea.vmem [#allocation5], %s248
    %v250 = vld [vmem:[%s249] sm:$0x1]
    %251 = vst [vmem:[#allocation2 + $0x31] sm:$0x1] %v250
    %s252 = sadd.s32 %s42, 42
    %s253 = sld [smem:[#allocation4 + %s252]]
    %s254 = scalar_lea.vmem [#allocation5], %s253
    %v255 = vld [vmem:[%s254] sm:$0x1]
    %256 = vst [vmem:[#allocation2 + $0x32] sm:$0x1] %v255
    %s257 = sadd.s32 %s42, 43
    %s258 = sld [smem:[#allocation4 + %s257]]
    %s259 = scalar_lea.vmem [#allocation5], %s258
    %v260 = vld [vmem:[%s259] sm:$0x1]
    %261 = vst [vmem:[#allocation2 + $0x33] sm:$0x1] %v260
    %s262 = sadd.s32 %s42, 44
    %s263 = sld [smem:[#allocation4 + %s262]]
    %s264 = scalar_lea.vmem [#allocation5], %s263
    %v265 = vld [vmem:[%s264] sm:$0x1]
    %266 = vst [vmem:[#allocation2 + $0x34] sm:$0x1] %v265
    %s267 = sadd.s32 %s42, 45
    %s268 = sld [smem:[#allocation4 + %s267]]
    %s269 = scalar_lea.vmem [#allocation5], %s268
    %v270 = vld [vmem:[%s269] sm:$0x1]
    %271 = vst [vmem:[#allocation2 + $0x35] sm:$0x1] %v270
    %s272 = sadd.s32 %s42, 46
    %s273 = sld [smem:[#allocation4 + %s272]]
    %s274 = scalar_lea.vmem [#allocation5], %s273
    %v275 = vld [vmem:[%s274] sm:$0x1]
    %276 = vst [vmem:[#allocation2 + $0x36] sm:$0x1] %v275
    %s277 = sadd.s32 %s42, 47
    %s278 = sld [smem:[#allocation4 + %s277]]
    %s279 = scalar_lea.vmem [#allocation5], %s278
    %v280 = vld [vmem:[%s279] sm:$0x1]
    %281 = vst [vmem:[#allocation2 + $0x37] sm:$0x1] %v280
    %s282 = sadd.s32 %s42, 48
    %s283 = sld [smem:[#allocation4 + %s282]]
    %s284 = scalar_lea.vmem [#allocation5], %s283
    %v285 = vld [vmem:[%s284] sm:$0x1]
    %286 = vst [vmem:[#allocation2 + $0x18] sm:$0x1] %v285
    %s287 = sadd.s32 %s42, 49
    %s288 = sld [smem:[#allocation4 + %s287]]
    %s289 = scalar_lea.vmem [#allocation5], %s288
    %v290 = vld [vmem:[%s289] sm:$0x1]
    %291 = vst [vmem:[#allocation2 + $0x19] sm:$0x1] %v290
    %s292 = sadd.s32 %s42, 50
    %s293 = sld [smem:[#allocation4 + %s292]]
    %s294 = scalar_lea.vmem [#allocation5], %s293
    %v295 = vld [vmem:[%s294] sm:$0x1]
    %296 = vst [vmem:[#allocation2 + $0x1a] sm:$0x1] %v295
    %s297 = sadd.s32 %s42, 51
    %s298 = sld [smem:[#allocation4 + %s297]]
    %s299 = scalar_lea.vmem [#allocation5], %s298
    %v300 = vld [vmem:[%s299] sm:$0x1]
    %301 = vst [vmem:[#allocation2 + $0x1b] sm:$0x1] %v300
    %s302 = sadd.s32 %s42, 52
    %s303 = sld [smem:[#allocation4 + %s302]]
    %s304 = scalar_lea.vmem [#allocation5], %s303
    %v305 = vld [vmem:[%s304] sm:$0x1]
    %306 = vst [vmem:[#allocation2 + $0x1c] sm:$0x1] %v305
    %s307 = sadd.s32 %s42, 53
    %s308 = sld [smem:[#allocation4 + %s307]]
    %s309 = scalar_lea.vmem [#allocation5], %s308
    %v310 = vld [vmem:[%s309] sm:$0x1]
    %311 = vst [vmem:[#allocation2 + $0x1d] sm:$0x1] %v310
    %s312 = sadd.s32 %s42, 54
    %s313 = sld [smem:[#allocation4 + %s312]]
    %s314 = scalar_lea.vmem [#allocation5], %s313
    %v315 = vld [vmem:[%s314] sm:$0x1]
    %316 = vst [vmem:[#allocation2 + $0x1e] sm:$0x1] %v315
    %s317 = sadd.s32 %s42, 55
    %s318 = sld [smem:[#allocation4 + %s317]]
    %s319 = scalar_lea.vmem [#allocation5], %s318
    %v320 = vld [vmem:[%s319] sm:$0x1]
    %321 = vst [vmem:[#allocation2 + $0x1f] sm:$0x1] %v320
    %s322 = sadd.s32 %s42, 56
    %s323 = sld [smem:[#allocation4 + %s322]]
    %s324 = scalar_lea.vmem [#allocation5], %s323
    %v325 = vld [vmem:[%s324] sm:$0x1]
    %326 = vst [vmem:[#allocation2 + $0x38] sm:$0x1] %v325
    %s327 = sadd.s32 %s42, 57
    %s328 = sld [smem:[#allocation4 + %s327]]
    %s329 = scalar_lea.vmem [#allocation5], %s328
    %v330 = vld [vmem:[%s329] sm:$0x1]
    %331 = vst [vmem:[#allocation2 + $0x39] sm:$0x1] %v330
    %s332 = sadd.s32 %s42, 58
    %s333 = sld [smem:[#allocation4 + %s332]]
    %s334 = scalar_lea.vmem [#allocation5], %s333
    %v335 = vld [vmem:[%s334] sm:$0x1]
    %336 = vst [vmem:[#allocation2 + $0x3a] sm:$0x1] %v335
    %s337 = sadd.s32 %s42, 59
    %s338 = sld [smem:[#allocation4 + %s337]]
    %s339 = scalar_lea.vmem [#allocation5], %s338
    %v340 = vld [vmem:[%s339] sm:$0x1]
    %341 = vst [vmem:[#allocation2 + $0x3b] sm:$0x1] %v340
    %s342 = sadd.s32 %s42, 60
    %s343 = sld [smem:[#allocation4 + %s342]]
    %s344 = scalar_lea.vmem [#allocation5], %s343
    %v345 = vld [vmem:[%s344] sm:$0x1]
    %346 = vst [vmem:[#allocation2 + $0x3c] sm:$0x1] %v345
    %s347 = sadd.s32 %s42, 61
    %s348 = sld [smem:[#allocation4 + %s347]]
    %s349 = scalar_lea.vmem [#allocation5], %s348
    %v350 = vld [vmem:[%s349] sm:$0x1]
    %351 = vst [vmem:[#allocation2 + $0x3d] sm:$0x1] %v350
    %s352 = sadd.s32 %s42, 62
    %s353 = sld [smem:[#allocation4 + %s352]]
    %s354 = scalar_lea.vmem [#allocation5], %s353
    %v355 = vld [vmem:[%s354] sm:$0x1]
    %356 = vst [vmem:[#allocation2 + $0x3e] sm:$0x1] %v355
    %s357 = sadd.s32 %s42, 63
    %s358 = sld [smem:[#allocation4 + %s357]]
    %s359 = scalar_lea.vmem [#allocation5], %s358
    %v360 = vld [vmem:[%s359] sm:$0x1]
    %361 = vst [vmem:[#allocation2 + $0x3f] sm:$0x1] %v360
    %v362 = vld [vmem:[#allocation2] sm:$0xff]
    %v363 = vld [vmem:[#allocation2 + $0x8] sm:$0xff]
    %v364 = vld [vmem:[#allocation2 + $0x10] sm:$0xff]
    %v365 = vld [vmem:[#allocation2 + $0x18] sm:$0xff]
    %v366 = vld [vmem:[#allocation2 + $0x20] sm:$0xff]
    %v367 = vld [vmem:[#allocation2 + $0x28] sm:$0xff]
    %v368 = vld [vmem:[#allocation2 + $0x30] sm:$0xff]
    %v369 = vld [vmem:[#allocation2 + $0x38] sm:$0xff]
    %v370 = vlaneseq
    %v371 = vand.u32 %v370, 127
    %v372 = vadd.s32 %v371, 128
    %v373 = vadd.s32 %v371, 256
    %v374 = vadd.s32 %v371, 384
    %vm375 = vcmp.lt.s32.totalorder %v371, 0
    %v376 = vsub.s32 0, %v371
    %v377 = vsel %vm375, %v376, %v371
    %v378 = vshrl.u32 %v377, 7
    %v379 = vand.u32 %v377, 127
    %v380 = vsub.s32 0, %v379
    %v381 = vsel %vm375, %v380, %v379
    %vm382 = vcmp.lt.s32.totalorder %v372, 0
    %v383 = vsub.s32 0, %v372
    %v384 = vsel %vm382, %v383, %v372
    %v385 = vshrl.u32 %v384, 7
    %v386 = vand.u32 %v384, 127
    %v387 = vsub.s32 0, %v386
    %v388 = vsel %vm382, %v387, %v386
    %vm389 = vcmp.lt.s32.totalorder %v373, 0
    %v390 = vsub.s32 0, %v373
    %v391 = vsel %vm389, %v390, %v373
    %v392 = vshrl.u32 %v391, 7
    %v393 = vand.u32 %v391, 127
    %v394 = vsub.s32 0, %v393
    %v395 = vsel %vm389, %v394, %v393
    %vm396 = vcmp.lt.s32.totalorder %v374, 0
    %v397 = vsub.s32 0, %v374
    %v398 = vsel %vm396, %v397, %v374
    %v399 = vshrl.u32 %v398, 7
    %v400 = vand.u32 %v398, 127
    %v401 = vsub.s32 0, %v400
    %v402 = vsel %vm396, %v401, %v400
    %vm403 = vcmp.ne.s32.totalorder %v381, 0
    %vm404 = vcmp.ne.s32.totalorder %v388, 0
    %vm405 = vcmp.ne.s32.totalorder %v395, 0
    %vm406 = vcmp.ne.s32.totalorder %v402, 0
    %vm407 = vcmp.lt.s32.totalorder %v381, 0
    %vm408 = vcmp.lt.s32.totalorder %v388, 0
    %vm409 = vcmp.lt.s32.totalorder %v395, 0
    %vm410 = vcmp.lt.s32.totalorder %v402, 0
    %vm411 = vmand %vm407, %vm403
    %vm412 = vmand %vm408, %vm404
    %vm413 = vmand %vm409, %vm405
    %vm414 = vmand %vm410, %vm406
    %v415 = vadd.s32 %v381, 128
    %v416 = vadd.s32 %v388, 128
    %v417 = vadd.s32 %v395, 128
    %v418 = vadd.s32 %v402, 128
    %v419 = vsel %vm411, %v415, %v381
    %v420 = vsel %vm412, %v416, %v388
    %v421 = vsel %vm413, %v417, %v395
    %v422 = vsel %vm414, %v418, %v402
    %vm423 = vcmp.ge.s32.totalorder %v419, 1
    %vm424 = vcmp.ge.s32.totalorder %v420, 1
    %vm425 = vcmp.ge.s32.totalorder %v421, 1
    %vm426 = vcmp.ge.s32.totalorder %v422, 1
    %427 = vrot.lane.b32.xlu0 %v362, 1
    %v428 = vpop.permute.xlu0 %427
    %429 = vrot.lane.b32.xlu0 %v366, 1
    %v430 = vpop.permute.xlu0 %429
    %431 = vrot.lane.b32.xlu0 %v363, 1
    %v432 = vpop.permute.xlu0 %431
    %433 = vrot.lane.b32.xlu0 %v367, 1
    %v434 = vpop.permute.xlu0 %433
    %435 = vrot.lane.b32.xlu0 %v364, 1
    %v436 = vpop.permute.xlu0 %435
    %437 = vrot.lane.b32.xlu0 %v368, 1
    %v438 = vpop.permute.xlu0 %437
    %439 = vrot.lane.b32.xlu0 %v365, 1
    %v440 = vpop.permute.xlu0 %439
    %441 = vrot.lane.b32.xlu0 %v369, 1
    %v442 = vpop.permute.xlu0 %441
    %vm443 = vcmp.lt.s32.totalorder %v371, 1
    %v444 = vsel %vm443, %v436, %v440
    %v445 = vsel %vm443, %v438, %v442
    %v446 = vsel %vm443, %v432, %v436
    %v447 = vsel %vm443, %v434, %v438
    %v448 = vsel %vm443, %v428, %v432
    %v449 = vsel %vm443, %v430, %v434
    %v450 = vsel %vm443, %v440, %v428
    %v451 = vsel %vm443, %v442, %v430
    %v452 = vsel %vm423, %v450, 0.0
    %v453 = vsel %vm424, %v448, 0.0
    %v454 = vsel %vm425, %v446, 0.0
    %v455 = vsel %vm426, %v444, 0.0
    %v456 = vsel %vm423, %v451, 0.0
    %v457 = vsel %vm424, %v449, 0.0
    %v458 = vsel %vm425, %v447, 0.0
    %v459 = vsel %vm426, %v445, 0.0
    %vm460 = vcmp.le.s32.totalorder %v419, 126
    %vm461 = vcmp.le.s32.totalorder %v420, 126
    %vm462 = vcmp.le.s32.totalorder %v421, 126
    %vm463 = vcmp.le.s32.totalorder %v422, 126
    %464 = vrot.lane.b32.xlu0 %v362, 127
    %v465 = vpop.permute.xlu0 %464
    %466 = vrot.lane.b32.xlu0 %v366, 127
    %v467 = vpop.permute.xlu0 %466
    %468 = vrot.lane.b32.xlu0 %v363, 127
    %v469 = vpop.permute.xlu0 %468
    %470 = vrot.lane.b32.xlu0 %v367, 127
    %v471 = vpop.permute.xlu0 %470
    %472 = vrot.lane.b32.xlu0 %v364, 127
    %v473 = vpop.permute.xlu0 %472
    %474 = vrot.lane.b32.xlu0 %v368, 127
    %v475 = vpop.permute.xlu0 %474
    %476 = vrot.lane.b32.xlu0 %v365, 127
    %v477 = vpop.permute.xlu0 %476
    %478 = vrot.lane.b32.xlu0 %v369, 127
    %v479 = vpop.permute.xlu0 %478
    %vm480 = vcmp.lt.s32.totalorder %v371, 127
    %v481 = vsel %vm480, %v473, %v477
    %v482 = vsel %vm480, %v475, %v479
    %v483 = vsel %vm480, %v469, %v473
    %v484 = vsel %vm480, %v471, %v475
    %v485 = vsel %vm480, %v465, %v469
    %v486 = vsel %vm480, %v467, %v471
    %v487 = vsel %vm480, %v477, %v465
    %v488 = vsel %vm480, %v479, %v467
    %v489 = vsel %vm460, %v485, 0.0
    %v490 = vsel %vm461, %v483, 0.0
    %v491 = vsel %vm462, %v481, 0.0
    %v492 = vsel %vm463, %v487, 0.0
    %v493 = vsel %vm460, %v486, 0.0
    %v494 = vsel %vm461, %v484, 0.0
    %v495 = vsel %vm462, %v482, 0.0
    %v496 = vsel %vm463, %v488, 0.0
    %v497 = vld [vmem:[%s2] sm:$0xff]
    %v498 = vld [vmem:[%s2 + $0x8] sm:$0xff]
    %v499 = vld [vmem:[%s3] sm:$0xff]
    %v500 = vld [vmem:[%s3 + $0x8] sm:$0xff]
    %502 = vset.pattern.permute.xlu0 0
    %503 = vperm.xlu0 %502, %v499
    %v504 = vpop.permute.xlu0 %503
    %507 = vset.pattern.permute.xlu0 0
    %508 = vperm.xlu0 %507, %v500
    %v509 = vpop.permute.xlu0 %508
    %vm511 = vcmask 392192
    %v513 = vsel %vm511, %v497, 0
    %v516 = vsel %vm511, %v498, 0
    %518 = vmatprep.subr.mxu0 %v453
    %519 = vmatpush1.msra.mxu0 %v452
    %520 = vmatprep.subr.mxu0 %v457
    %521 = vmatpush1.msra.mxu0 %v456
    %522 = vmatprep.subr.mxu0 %v363
    %523 = vmatpush1.msra.mxu0 %v362
    %524 = vmatprep.subr.mxu0 %v367
    %525 = vmatpush1.msra.mxu0 %v366
    %526 = vmatprep.subr.mxu0 %v490
    %527 = vmatpush1.msra.mxu0 %v489
    %528 = vmatprep.subr.mxu0 %v494
    %529 = vmatpush1.msra.mxu0 %v493
    %530 = vmatprep.subr.mxu0 0.0
    %531 = vmatpush1.msra.mxu0 0.0
    %532 = vmatprep.subr.mxu0 0.0
    %533 = vmatpush1.msra.mxu0 0.0
    %534 = vmatprep.subr.mxu0 0.0
    %535 = vmatpush1.msra.mxu0 0.0
    %536 = vmatprep.subr.mxu0 0.0
    %537 = vmatpush1.msra.mxu0 0.0
    %538 = vmatprep.subr.mxu0 0.0
    %539 = vmatpush1.msra.mxu0 0.0
    %540 = vmatprep.subr.mxu0 0.0
    %541 = vmatpush1.msra.mxu0 0.0
    %542 = vmatprep.subr.mxu0 0.0
    %543 = vmatpush1.msra.mxu0 0.0
    %544 = vmatprep.subr.mxu0 0.0
    %545 = vmatpush1.msra.mxu0 0.0
    %546 = vmatprep.subr.mxu0 0.0
    %547 = vmatpush1.msra.mxu0 0.0
    %548 = vmatprep.subr.mxu0 0.0
    %549 = vmatpush1.msra.mxu0 0.0
    %550 = vmatprep.subr.mxu0 0.0
    %551 = vmatpush1.msra.mxu0 0.0
    %552 = vmatprep.subr.mxu0 0.0
    %553 = vmatpush1.msra.mxu0 0.0
    %554 = vmatprep.subr.mxu0 0.0
    %555 = vmatpush1.msra.mxu0 0.0
    %556 = vmatprep.subr.mxu0 0.0
    %557 = vmatpush1.msra.mxu0 0.0
    %558 = vmatprep.subr.mxu0 0.0
    %559 = vmatpush1.msra.mxu0 0.0
    %560 = vmatprep.subr.mxu0 0.0
    %561 = vmatpush1.msra.mxu0 0.0
    %562 = vmatprep.subr.mxu0 0.0
    %563 = vmatpush1.msra.mxu0 0.0
    %564 = vmatprep.subr.mxu0 0.0
    %565 = vmatpush1.msra.mxu0 0.0
    %566 = vmatprep.subr.mxu0 0.0
    %567 = vmatpush1.msra.mxu0 0.0
    %568 = vmatprep.subr.mxu0 0.0
    %569 = vmatpush1.msra.mxu0 0.0
    %570 = vmatprep.subr.mxu0 0.0
    %571 = vmatpush1.msra.mxu0 0.0
    %572 = vmatprep.subr.mxu0 0.0
    %573 = vmatpush1.msra.mxu0 0.0
    %574 = vmatprep.subr.mxu0 0.0
    %575 = vmatpush1.msra.mxu0 0.0
    %576 = vmatprep.subr.mxu0 0.0
    %577 = vmatpush1.msra.mxu0 0.0
    %578 = vmatprep.subr.mxu0 0.0
    %579 = vmatpush1.msra.mxu0 0.0
    %580 = vmatprep.subr.mxu0 0.0
    %581 = vmatpush1.msra.mxu0 0.0
    %582 = vmatprep.mubr.f32.mxu0 0.0
    %583 = vmatmul.mubr.f32.gmra.mrb[0].mxu0 %v513
    %v584 = vpop.f32.mrb[0].mxu0
    %v585 = vadd.f32 %v504, %v584
    %v586 = vpop.f32.mrb[0].mxu0
    %v587 = vadd.f32 %v504, %v586
    %588 = vmatprep.mubr.f32.mxu0 0.0
    %589 = vmatmul.mubr.f32.gmra.mrb[0].mxu0 %v516
    %v590 = vpop.f32.mrb[0].mxu0
    %v591 = vadd.f32 %v509, %v590
    %v592 = vpop.f32.mrb[0].mxu0
    %v593 = vadd.f32 %v509, %v592
    %594 = vdwg.mxu0
    %595 = vmatprep.subr.mxu0 %v455
    %596 = vmatpush1.msra.mxu0 %v454
    %597 = vmatprep.subr.mxu0 %v459
    %598 = vmatpush1.msra.mxu0 %v458
    %599 = vmatprep.subr.mxu0 %v365
    %600 = vmatpush1.msra.mxu0 %v364
    %601 = vmatprep.subr.mxu0 %v369
    %602 = vmatpush1.msra.mxu0 %v368
    %603 = vmatprep.subr.mxu0 %v492
    %604 = vmatpush1.msra.mxu0 %v491
    %605 = vmatprep.subr.mxu0 %v496
    %606 = vmatpush1.msra.mxu0 %v495
    %607 = vmatprep.subr.mxu0 0.0
    %608 = vmatpush1.msra.mxu0 0.0
    %609 = vmatprep.subr.mxu0 0.0
    %610 = vmatpush1.msra.mxu0 0.0
    %611 = vmatprep.subr.mxu0 0.0
    %612 = vmatpush1.msra.mxu0 0.0
    %613 = vmatprep.subr.mxu0 0.0
    %614 = vmatpush1.msra.mxu0 0.0
    %615 = vmatprep.subr.mxu0 0.0
    %616 = vmatpush1.msra.mxu0 0.0
    %617 = vmatprep.subr.mxu0 0.0
    %618 = vmatpush1.msra.mxu0 0.0
    %619 = vmatprep.subr.mxu0 0.0
    %620 = vmatpush1.msra.mxu0 0.0
    %621 = vmatprep.subr.mxu0 0.0
    %622 = vmatpush1.msra.mxu0 0.0
    %623 = vmatprep.subr.mxu0 0.0
    %624 = vmatpush1.msra.mxu0 0.0
    %625 = vmatprep.subr.mxu0 0.0
    %626 = vmatpush1.msra.mxu0 0.0
    %627 = vmatprep.subr.mxu0 0.0
    %628 = vmatpush1.msra.mxu0 0.0
    %629 = vmatprep.subr.mxu0 0.0
    %630 = vmatpush1.msra.mxu0 0.0
    %631 = vmatprep.subr.mxu0 0.0
    %632 = vmatpush1.msra.mxu0 0.0
    %633 = vmatprep.subr.mxu0 0.0
    %634 = vmatpush1.msra.mxu0 0.0
    %635 = vmatprep.subr.mxu0 0.0
    %636 = vmatpush1.msra.mxu0 0.0
    %637 = vmatprep.subr.mxu0 0.0
    %638 = vmatpush1.msra.mxu0 0.0
    %639 = vmatprep.subr.mxu0 0.0
    %640 = vmatpush1.msra.mxu0 0.0
    %641 = vmatprep.subr.mxu0 0.0
    %642 = vmatpush1.msra.mxu0 0.0
    %643 = vmatprep.subr.mxu0 0.0
    %644 = vmatpush1.msra.mxu0 0.0
    %645 = vmatprep.subr.mxu0 0.0
    %646 = vmatpush1.msra.mxu0 0.0
    %647 = vmatprep.subr.mxu0 0.0
    %648 = vmatpush1.msra.mxu0 0.0
    %649 = vmatprep.subr.mxu0 0.0
    %650 = vmatpush1.msra.mxu0 0.0
    %651 = vmatprep.subr.mxu0 0.0
    %652 = vmatpush1.msra.mxu0 0.0
    %653 = vmatprep.subr.mxu0 0.0
    %654 = vmatpush1.msra.mxu0 0.0
    %655 = vmatprep.subr.mxu0 0.0
    %656 = vmatpush1.msra.mxu0 0.0
    %657 = vmatprep.subr.mxu0 0.0
    %658 = vmatpush1.msra.mxu0 0.0
    %659 = vmatprep.mubr.f32.mxu0 0.0
    %660 = vmatmul.mubr.f32.gmra.mrb[0].mxu0 %v513
    %v661 = vpop.f32.mrb[0].mxu0
    %v662 = vadd.f32 %v504, %v661
    %v663 = vpop.f32.mrb[0].mxu0
    %v664 = vadd.f32 %v504, %v663
    %665 = vmatprep.mubr.f32.mxu0 0.0
    %666 = vmatmul.mubr.f32.gmra.mrb[0].mxu0 %v516
    %v667 = vpop.f32.mrb[0].mxu0
    %v668 = vadd.f32 %v509, %v667
    %v669 = vpop.f32.mrb[0].mxu0
    %v670 = vadd.f32 %v509, %v669
    %671 = vdwg.mxu0
    %v672 = vmax.f32 %v585, 0.0
    %v673 = vmax.f32 %v587, 0.0
    %v674 = vmax.f32 %v662, 0.0
    %v675 = vmax.f32 %v664, 0.0
    %v676 = vmax.f32 %v591, 0.0
    %v677 = vmax.f32 %v593, 0.0
    %v678 = vmax.f32 %v668, 0.0
    %v679 = vmax.f32 %v670, 0.0
    %v680 = vld [vmem:[%s4] sm:$0xff]
    %v681 = vld [vmem:[%s4 + $0x8] sm:$0xff]
    %682 = vmax.xlane.f32.xlu0 %v672
    %v683 = vpop.xlane.xlu0 %682
    %684 = vmax.xlane.f32.xlu0 %v676
    %v685 = vpop.xlane.xlu0 %684
    %v686 = vmul.f32 %v683, %v680
    %v687 = vmul.f32 %v685, %v681
    %vm688 = vcmask 31744
    %v689 = vsel %vm688, %v686, 0.0
    %v690 = vsel %vm688, %v687, 0.0
    %v691 = vadd.f32 %v689, %v690
    %v692 = vrot.slane %v691, 4
    %v693 = vadd.f32 %v691, %v692
    %v694 = vrot.slane %v693, 2
    %v695 = vadd.f32 %v693, %v694
    %v696 = vrot.slane %v695, 1
    %v697 = vadd.f32 %v695, %v696
    %698 = vmax.xlane.f32.xlu0 %v673
    %v699 = vpop.xlane.xlu0 %698
    %700 = vmax.xlane.f32.xlu0 %v677
    %v701 = vpop.xlane.xlu0 %700
    %v702 = vmul.f32 %v699, %v680
    %v703 = vmul.f32 %v701, %v681
    %v704 = vsel %vm688, %v702, 0.0
    %v705 = vsel %vm688, %v703, 0.0
    %v706 = vadd.f32 %v704, %v705
    %v707 = vrot.slane %v706, 4
    %v708 = vadd.f32 %v706, %v707
    %v709 = vrot.slane %v708, 2
    %v710 = vadd.f32 %v708, %v709
    %v711 = vrot.slane %v710, 1
    %v712 = vadd.f32 %v710, %v711
    %713 = vmax.xlane.f32.xlu0 %v674
    %v714 = vpop.xlane.xlu0 %713
    %715 = vmax.xlane.f32.xlu0 %v678
    %v716 = vpop.xlane.xlu0 %715
    %v717 = vmul.f32 %v714, %v680
    %v718 = vmul.f32 %v716, %v681
    %v719 = vsel %vm688, %v717, 0.0
    %v720 = vsel %vm688, %v718, 0.0
    %v721 = vadd.f32 %v719, %v720
    %v722 = vrot.slane %v721, 4
    %v723 = vadd.f32 %v721, %v722
    %v724 = vrot.slane %v723, 2
    %v725 = vadd.f32 %v723, %v724
    %v726 = vrot.slane %v725, 1
    %v727 = vadd.f32 %v725, %v726
    %728 = vmax.xlane.f32.xlu0 %v675
    %v729 = vpop.xlane.xlu0 %728
    %730 = vmax.xlane.f32.xlu0 %v679
    %v731 = vpop.xlane.xlu0 %730
    %v732 = vmul.f32 %v729, %v680
    %v733 = vmul.f32 %v731, %v681
    %v734 = vsel %vm688, %v732, 0.0
    %v735 = vsel %vm688, %v733, 0.0
    %v736 = vadd.f32 %v734, %v735
    %v737 = vrot.slane %v736, 4
    %v738 = vadd.f32 %v736, %v737
    %v739 = vrot.slane %v738, 2
    %v740 = vadd.f32 %v738, %v739
    %v741 = vrot.slane %v740, 1
    %v742 = vadd.f32 %v740, %v741
    %vm743 = vcmask 1040384
    %v744 = vsel %vm743, %v697, %v712
    %vm745 = vcmask 1041408
    %v746 = vsel %vm745, %v744, %v727
    %vm747 = vcmask 1042432
    %v748 = vsel %vm747, %v746, %v742
    %v749 = vld [vmem:[%s5] sm:$0x1]
    %v751 = vlaneseq
    %v752 = vshrl.u32 %v751, 7
    %v753 = vsub.s32 0, %v752
    %v754 = vrot.slane %v749, %v753
    %v756 = vadd.f32 %v748, %v754
    %vm757 = vcmask 27648
    %758 = vst.msk [vmem:[#allocation8] sm:$0xf] %vm757, %v756
    // Predicated region
    $region26: #{tpu_custom_call.1} parent=1 // pred_check
      _
    $region27: #{tpu_custom_call.1} parent=1 // pred_check_branch
      %760 = sbr.rel (0) target = $region29
    $region28: #{tpu_custom_call.1} parent=1 // pred_region
      %s762 = ssub.s32 64, 64
      %763 = vsyncadd [#allocation7], %s762
      %s765 = sshll.u32 [#allocation8], 4
      %s766 = int_to_ptr.vmem [resolvable:$true] %s765
      %768 = dma.vmem_to_hbm [thread:$0]  %s766, 64, %s6, [#allocation7]
    $region29: #{tpu_custom_call.1} parent=1 // pred_fallthru
      _
    // Predicated region
    $region30: #{tpu_custom_call.1} parent=1 // pred_check
      _
    $region31: #{tpu_custom_call.1} parent=1 // pred_check_branch
      %770 = sbr.rel (0) target = $region33
    $region32: #{tpu_custom_call.1} parent=1 // pred_region
      %771 = dma.done [#allocation7], 64
    $region33: #{tpu_custom_call.1} parent=1 // pred_fallthru
      _
    %772 = vsyncpa [#allocation6], 1
    %773 = vsyncpa [#allocation7], 1

</llo_original>
